<compile_context>
chip_gen: v7x
topology: tpu7x:2x2x1
jax: 0.10.0
libtpu: 0.0.40
codegen_flags: <defaults>
</compile_context>

<pallas_src>
import functools

import jax
import jax.numpy as jnp
from jax.experimental import pallas as pl
from jax.experimental.pallas import tpu as pltpu


def _round_up(a, b):
    return ((a + b - 1) // b) * b


def _cdiv(a, b):
    return (a + b - 1) // b


def _fused_conv_relu_conv_tanh_kernel(x_ref, halo_ref, w1_ref, b1_ref, w2_ref,
                                      b2_ref, o_ref, xbuf_ref, patch_ref,
                                      *, shifts, c_pad, tm):
    # x_ref    : [C_pad, TM]        raw input tile (bf16), (n,h,w)-flattened on lanes
    # halo_ref : [C_pad, HALO_PAD]  next HALO_PAD input columns (bf16)
    # w1_ref   : [C1, K_pad]        conv1 weight, (kh,kw,c)-flattened, zero-padded (bf16)
    # b1_ref   : [C1, 1]            f32
    # w2_ref   : [C2, C1]           conv2 (1x1) weight (bf16)
    # b2_ref   : [C2, 1]            f32
    # o_ref    : [C2, TM]           bf16, lane-dense output tile
    # xbuf_ref : [C_pad, TM+HALO]   VMEM scratch: contiguous haloed input window
    # patch_ref: [K_pad, TM]        VMEM scratch: in-kernel im2col patch matrix

    # Contiguous haloed window (both stores are lane- and sublane-aligned).
    xbuf_ref[:, :tm] = x_ref[...]
    xbuf_ref[:, tm:] = halo_ref[...]

    # In-kernel im2col: one statically lane-shifted slice per (kh, kw) tap.
    # Offsets are compile-time constants -> XLU lane rotates + aligned VMEM stores.
    for idx, s in enumerate(shifts):
        patch_ref[idx * c_pad:(idx + 1) * c_pad, :] = xbuf_ref[:, s:s + tm]

    # conv1 as a single K_pad-deep matmul (bf16 operands, f32 accumulation) + bias + ReLU
    y1 = jnp.dot(w1_ref[...], patch_ref[...],
                 preferred_element_type=jnp.float32) + b1_ref[...]
    y2 = jnp.maximum(y1, 0.0).astype(jnp.bfloat16)
    # conv2 (1x1) + bias + tanh
    y3 = jnp.dot(w2_ref[...], y2,
                 preferred_element_type=jnp.float32) + b2_ref[...]
    o_ref[...] = jnp.tanh(y3).astype(o_ref.dtype)


def model_tanh_forward(x, w1, b1, w2, b2, *, tm_target=2048):
    """x: (N, 10, H, W) f32.  w1: (20,10,4,4), b1: (20,), w2: (20,20,1,1), b2: (20,)."""
    n, c_in, h, w = x.shape
    c1, _, kh, kw = w1.shape
    c2 = w2.shape[0]
    oh, ow = h - kh + 1, w - kw + 1

    c_pad = _round_up(c_in, 16)          # packed-bf16 sublane granule
    k_pad = kh * kw * c_pad              # 256: same MXU cost as 160 (K pads to 256)

    halo = (kh - 1) * w + (kw - 1)       # max flat shift of a conv tap
    halo_pad = _round_up(max(halo, 1), 128)

    # conv1 is evaluated over the full (n, h, w) grid via the flat-shift trick; the
    # invalid (kh-1)-row / (kw-1)-col border is cropped after the kernel.
    m_flat = n * h * w
    m128 = _round_up(m_flat, halo_pad)
    n_tiles = max(1, _cdiv(m128, tm_target))
    if m128 >= 2 * halo_pad:             # >= 2 tiles so both v7x TensorCores get work
        n_tiles = max(n_tiles, 2)
    tm = _round_up(_cdiv(m128, n_tiles), halo_pad)
    n_tiles = _cdiv(m128, tm)
    m_pad = n_tiles * tm
    m_total = m_pad + halo_pad           # one extra halo granule for the last tile

    # Raw input: cast to bf16 FIRST, then layout -> no f32 intermediate in HBM.
    x_t = x.astype(jnp.bfloat16).transpose(1, 0, 2, 3).reshape(c_in, m_flat)
    x_t = jnp.pad(x_t, ((0, c_pad - c_in), (0, m_total - m_flat)))

    # conv1 weight -> [C1, K_pad] with (kh, kw, c) ordering + zero channel padding,
    # matching the patch-row layout built inside the kernel.
    w1_mat = jnp.pad(w1.transpose(0, 2, 3, 1),
                     ((0, 0), (0, 0), (0, 0), (0, c_pad - c_in)))
    w1_mat = w1_mat.reshape(c1, k_pad).astype(jnp.bfloat16)
    b1_col = b1.reshape(c1, 1).astype(jnp.float32)
    w2_mat = w2.reshape(c2, c1).astype(jnp.bfloat16)
    b2_col = b2.reshape(c2, 1).astype(jnp.float32)

    shifts = tuple(ki * w + kj for ki in range(kh) for kj in range(kw))
    r = tm // halo_pad                   # halo block-index stride (tm % halo_pad == 0)

    kernel = functools.partial(_fused_conv_relu_conv_tanh_kernel,
                               shifts=shifts, c_pad=c_pad, tm=tm)

    cost = pl.CostEstimate(
        flops=2 * m_pad * k_pad * c1 + 2 * m_pad * c1 * c2,
        transcendentals=m_pad * c2,
        bytes_accessed=(x_t.size * 2 + w1_mat.size * 2 + w2_mat.size * 2
                        + c2 * m_pad * 2 + (c1 + c2) * 4),
    )

    out_flat = pl.pallas_call(
        kernel,
        out_shape=jax.ShapeDtypeStruct((c2, m_pad), jnp.bfloat16),
        grid_spec=pltpu.PrefetchScalarGridSpec(
            num_scalar_prefetch=0,
            grid=(n_tiles,),
            in_specs=[
                pl.BlockSpec((c_pad, tm), lambda i: (0, i)),                  # input tile
                pl.BlockSpec((c_pad, halo_pad), lambda i: (0, (i + 1) * r)),  # halo tile
                pl.BlockSpec((c1, k_pad), lambda i: (0, 0)),                  # w1 resident
                pl.BlockSpec((c1, 1), lambda i: (0, 0)),                      # b1 resident
                pl.BlockSpec((c2, c1), lambda i: (0, 0)),                     # w2 resident
                pl.BlockSpec((c2, 1), lambda i: (0, 0)),                      # b2 resident
            ],
            out_specs=pl.BlockSpec((c2, tm), lambda i: (0, i)),               # lane-dense
            scratch_shapes=[
                pltpu.VMEM((c_pad, tm + halo_pad), jnp.bfloat16),   # haloed input window
                pltpu.VMEM((k_pad, tm), jnp.bfloat16),              # im2col patch matrix
            ],
        ),
        compiler_params=pltpu.CompilerParams(
            dimension_semantics=("parallel",)),                     # megacore on v7x
        cost_estimate=cost,
    )(x_t, x_t, w1_mat, b1_col, w2_mat, b2_col)

    # [C2, m_pad] -> valid columns -> (C2, N, H, W) -> crop conv border -> NCHW (f32)
    out = out_flat[:, :m_flat].reshape(c2, n, h, w)[:, :, :oh, :ow]
    return out.transpose(1, 0, 2, 3).astype(jnp.float32)


def _reference_forward(x, w1, b1, w2, b2):
    """Pure-JAX reference matching the PyTorch module (f32)."""
    dn = ("NCHW", "OIHW", "NCHW")
    y1 = jax.lax.conv_general_dilated(x, w1, (1, 1), "VALID",
                                      dimension_numbers=dn) + b1.reshape(1, -1, 1, 1)
    y2 = jnp.maximum(y1, 0.0)
    y3 = jax.lax.conv_general_dilated(y2, w2, (1, 1), "VALID",
                                      dimension_numbers=dn) + b2.reshape(1, -1, 1, 1)
    return jnp.tanh(y3)


def _init_params(key):
    """Deterministic params matching PyTorch Conv2d default init shapes."""
    k1, k2, k3, k4 = jax.random.split(key, 4)
    # conv1: Conv2d(10, 20, (4,4))  fan_in = 10*4*4 = 160
    bound1 = 1.0 / jnp.sqrt(160.0)
    w1 = jax.random.uniform(k1, (20, 10, 4, 4), jnp.float32, -bound1, bound1)
    b1 = jax.random.uniform(k2, (20,), jnp.float32, -bound1, bound1)
    # conv2: Conv2d(20, 20, (1,1))  fan_in = 20
    bound2 = 1.0 / jnp.sqrt(20.0)
    w2 = jax.random.uniform(k3, (20, 20, 1, 1), jnp.float32, -bound2, bound2)
    b2 = jax.random.uniform(k4, (20,), jnp.float32, -bound2, bound2)
    return w1, b1, w2, b2


if __name__ == "__main__":
    key = jax.random.PRNGKey(0)
    kx, kp = jax.random.split(key)

    # Small input consistent with Conv2d(10, ...): N=2, C=10, H=W=16
    x = jax.random.normal(kx, (2, 10, 16, 16), jnp.float32)
    w1, b1, w2, b2 = _init_params(kp)

    fwd = jax.jit(model_tanh_forward)
    out = jax.block_until_ready(fwd(x, w1, b1, w2, b2))

    # Shape matches PyTorch semantics: (2, 20, 13, 13)
    assert out.shape == (2, 20, 13, 13), out.shape
    assert bool(jnp.all(jnp.isfinite(out)))

    # Numerical check against the f32 reference (bf16 operands -> loose tolerance).
    ref = jax.block_until_ready(_reference_forward(x, w1, b1, w2, b2))
    max_err = float(jnp.max(jnp.abs(out - ref)))
    assert max_err < 5e-2, f"max abs error {max_err}"

    print("KERNEL_OK")
</pallas_src>

<mosaic_0001>
module attributes {stable_mosaic.version = 11 : i64} {
  func.func @_fused_conv_relu_conv_tanh_kernel(%arg0: i32, %arg1: memref<16x256xbf16, #tpu.memory_space<vmem>>, %arg2: memref<16x128xbf16, #tpu.memory_space<vmem>>, %arg3: memref<20x256xbf16, #tpu.memory_space<vmem>>, %arg4: memref<20x1xf32, #tpu.memory_space<vmem>>, %arg5: memref<20x20xbf16, #tpu.memory_space<vmem>>, %arg6: memref<20x1xf32, #tpu.memory_space<vmem>>, %arg7: memref<20x256xbf16, #tpu.memory_space<vmem>>, %arg8: memref<16x384xbf16, #tpu.memory_space<vmem>>, %arg9: memref<256x256xbf16, #tpu.memory_space<vmem>>) attributes {dimension_semantics = [#tpu.dimension_semantics<parallel>], iteration_bounds = array<i64: 2>, scalar_prefetch = 0 : i64, scratch_operands = 2 : i64, tpu.core_type = #tpu.core_type<tc>, window_params = [{transform_indices = @transform_0, window_bounds = array<i64: 16, 256>}, {transform_indices = @transform_1, window_bounds = array<i64: 16, 128>}, {pipeline_mode = #tpu.pipeline_mode<synchronous>, transform_indices = @transform_2, window_bounds = array<i64: 20, 256>}, {pipeline_mode = #tpu.pipeline_mode<synchronous>, transform_indices = @transform_3, window_bounds = array<i64: 20, 1>}, {pipeline_mode = #tpu.pipeline_mode<synchronous>, transform_indices = @transform_4, window_bounds = array<i64: 20, 20>}, {pipeline_mode = #tpu.pipeline_mode<synchronous>, transform_indices = @transform_5, window_bounds = array<i64: 20, 1>}, {transform_indices = @transform_6, window_bounds = array<i64: 20, 256>}]} {
    %c0 = arith.constant 0 : index
    %c0_0 = arith.constant 0 : index
    %0 = vector.load %arg1[%c0, %c0_0] : memref<16x256xbf16, #tpu.memory_space<vmem>>, vector<16x256xbf16>
    %c0_1 = arith.constant 0 : index
    %c0_2 = arith.constant 0 : index
    %1 = vector.load %arg8[%c0_1, %c0_2] : memref<16x384xbf16, #tpu.memory_space<vmem>>, vector<16x256xbf16>
    tpu.vector_store %arg8[%c0_1, %c0_2], %0 {strides = array<i32>} : memref<16x384xbf16, #tpu.memory_space<vmem>>, vector<16x256xbf16>,
    %c0_3 = arith.constant 0 : index
    %c0_4 = arith.constant 0 : index
    %2 = vector.load %arg2[%c0_3, %c0_4] : memref<16x128xbf16, #tpu.memory_space<vmem>>, vector<16x128xbf16>
    %c0_5 = arith.constant 0 : index
    %c256 = arith.constant 256 : index
    %3 = vector.load %arg8[%c0_5, %c256] : memref<16x384xbf16, #tpu.memory_space<vmem>>, vector<16x128xbf16>
    tpu.vector_store %arg8[%c0_5, %c256], %2 {strides = array<i32>} : memref<16x384xbf16, #tpu.memory_space<vmem>>, vector<16x128xbf16>,
    %c0_6 = arith.constant 0 : index
    %c0_7 = arith.constant 0 : index
    %4 = vector.load %arg8[%c0_6, %c0_7] : memref<16x384xbf16, #tpu.memory_space<vmem>>, vector<16x256xbf16>
    %c0_8 = arith.constant 0 : index
    %c0_9 = arith.constant 0 : index
    %5 = vector.load %arg9[%c0_8, %c0_9] : memref<256x256xbf16, #tpu.memory_space<vmem>>, vector<16x256xbf16>
    tpu.vector_store %arg9[%c0_8, %c0_9], %4 {strides = array<i32>} : memref<256x256xbf16, #tpu.memory_space<vmem>>, vector<16x256xbf16>,
    %c0_10 = arith.constant 0 : index
    %c1 = arith.constant 1 : index
    %6 = vector.load %arg8[%c0_10, %c1] : memref<16x384xbf16, #tpu.memory_space<vmem>>, vector<16x256xbf16>
    %c16 = arith.constant 16 : index
    %c0_11 = arith.constant 0 : index
    %7 = vector.load %arg9[%c16, %c0_11] : memref<256x256xbf16, #tpu.memory_space<vmem>>, vector<16x256xbf16>
    tpu.vector_store %arg9[%c16, %c0_11], %6 {strides = array<i32>} : memref<256x256xbf16, #tpu.memory_space<vmem>>, vector<16x256xbf16>,
    %c0_12 = arith.constant 0 : index
    %c2 = arith.constant 2 : index
    %8 = vector.load %arg8[%c0_12, %c2] : memref<16x384xbf16, #tpu.memory_space<vmem>>, vector<16x256xbf16>
    %c32 = arith.constant 32 : index
    %c0_13 = arith.constant 0 : index
    %9 = vector.load %arg9[%c32, %c0_13] : memref<256x256xbf16, #tpu.memory_space<vmem>>, vector<16x256xbf16>
    tpu.vector_store %arg9[%c32, %c0_13], %8 {strides = array<i32>} : memref<256x256xbf16, #tpu.memory_space<vmem>>, vector<16x256xbf16>,
    %c0_14 = arith.constant 0 : index
    %c3 = arith.constant 3 : index
    %10 = vector.load %arg8[%c0_14, %c3] : memref<16x384xbf16, #tpu.memory_space<vmem>>, vector<16x256xbf16>
    %c48 = arith.constant 48 : index
    %c0_15 = arith.constant 0 : index
    %11 = vector.load %arg9[%c48, %c0_15] : memref<256x256xbf16, #tpu.memory_space<vmem>>, vector<16x256xbf16>
    tpu.vector_store %arg9[%c48, %c0_15], %10 {strides = array<i32>} : memref<256x256xbf16, #tpu.memory_space<vmem>>, vector<16x256xbf16>,
    %c0_16 = arith.constant 0 : index
    %c16_17 = arith.constant 16 : index
    %12 = vector.load %arg8[%c0_16, %c16_17] : memref<16x384xbf16, #tpu.memory_space<vmem>>, vector<16x256xbf16>
    %c64 = arith.constant 64 : index
    %c0_18 = arith.constant 0 : index
    %13 = vector.load %arg9[%c64, %c0_18] : memref<256x256xbf16, #tpu.memory_space<vmem>>, vector<16x256xbf16>
    tpu.vector_store %arg9[%c64, %c0_18], %12 {strides = array<i32>} : memref<256x256xbf16, #tpu.memory_space<vmem>>, vector<16x256xbf16>,
    %c0_19 = arith.constant 0 : index
    %c17 = arith.constant 17 : index
    %14 = vector.load %arg8[%c0_19, %c17] : memref<16x384xbf16, #tpu.memory_space<vmem>>, vector<16x256xbf16>
    %c80 = arith.constant 80 : index
    %c0_20 = arith.constant 0 : index
    %15 = vector.load %arg9[%c80, %c0_20] : memref<256x256xbf16, #tpu.memory_space<vmem>>, vector<16x256xbf16>
    tpu.vector_store %arg9[%c80, %c0_20], %14 {strides = array<i32>} : memref<256x256xbf16, #tpu.memory_space<vmem>>, vector<16x256xbf16>,
    %c0_21 = arith.constant 0 : index
    %c18 = arith.constant 18 : index
    %16 = vector.load %arg8[%c0_21, %c18] : memref<16x384xbf16, #tpu.memory_space<vmem>>, vector<16x256xbf16>
    %c96 = arith.constant 96 : index
    %c0_22 = arith.constant 0 : index
    %17 = vector.load %arg9[%c96, %c0_22] : memref<256x256xbf16, #tpu.memory_space<vmem>>, vector<16x256xbf16>
    tpu.vector_store %arg9[%c96, %c0_22], %16 {strides = array<i32>} : memref<256x256xbf16, #tpu.memory_space<vmem>>, vector<16x256xbf16>,
    %c0_23 = arith.constant 0 : index
    %c19 = arith.constant 19 : index
    %18 = vector.load %arg8[%c0_23, %c19] : memref<16x384xbf16, #tpu.memory_space<vmem>>, vector<16x256xbf16>
    %c112 = arith.constant 112 : index
    %c0_24 = arith.constant 0 : index
    %19 = vector.load %arg9[%c112, %c0_24] : memref<256x256xbf16, #tpu.memory_space<vmem>>, vector<16x256xbf16>
    tpu.vector_store %arg9[%c112, %c0_24], %18 {strides = array<i32>} : memref<256x256xbf16, #tpu.memory_space<vmem>>, vector<16x256xbf16>,
    %c0_25 = arith.constant 0 : index
    %c32_26 = arith.constant 32 : index
    %20 = vector.load %arg8[%c0_25, %c32_26] : memref<16x384xbf16, #tpu.memory_space<vmem>>, vector<16x256xbf16>
    %c128 = arith.constant 128 : index
    %c0_27 = arith.constant 0 : index
    %21 = vector.load %arg9[%c128, %c0_27] : memref<256x256xbf16, #tpu.memory_space<vmem>>, vector<16x256xbf16>
    tpu.vector_store %arg9[%c128, %c0_27], %20 {strides = array<i32>} : memref<256x256xbf16, #tpu.memory_space<vmem>>, vector<16x256xbf16>,
    %c0_28 = arith.constant 0 : index
    %c33 = arith.constant 33 : index
    %22 = vector.load %arg8[%c0_28, %c33] : memref<16x384xbf16, #tpu.memory_space<vmem>>, vector<16x256xbf16>
    %c144 = arith.constant 144 : index
    %c0_29 = arith.constant 0 : index
    %23 = vector.load %arg9[%c144, %c0_29] : memref<256x256xbf16, #tpu.memory_space<vmem>>, vector<16x256xbf16>
    tpu.vector_store %arg9[%c144, %c0_29], %22 {strides = array<i32>} : memref<256x256xbf16, #tpu.memory_space<vmem>>, vector<16x256xbf16>,
    %c0_30 = arith.constant 0 : index
    %c34 = arith.constant 34 : index
    %24 = vector.load %arg8[%c0_30, %c34] : memref<16x384xbf16, #tpu.memory_space<vmem>>, vector<16x256xbf16>
    %c160 = arith.constant 160 : index
    %c0_31 = arith.constant 0 : index
    %25 = vector.load %arg9[%c160, %c0_31] : memref<256x256xbf16, #tpu.memory_space<vmem>>, vector<16x256xbf16>
    tpu.vector_store %arg9[%c160, %c0_31], %24 {strides = array<i32>} : memref<256x256xbf16, #tpu.memory_space<vmem>>, vector<16x256xbf16>,
    %c0_32 = arith.constant 0 : index
    %c35 = arith.constant 35 : index
    %26 = vector.load %arg8[%c0_32, %c35] : memref<16x384xbf16, #tpu.memory_space<vmem>>, vector<16x256xbf16>
    %c176 = arith.constant 176 : index
    %c0_33 = arith.constant 0 : index
    %27 = vector.load %arg9[%c176, %c0_33] : memref<256x256xbf16, #tpu.memory_space<vmem>>, vector<16x256xbf16>
    tpu.vector_store %arg9[%c176, %c0_33], %26 {strides = array<i32>} : memref<256x256xbf16, #tpu.memory_space<vmem>>, vector<16x256xbf16>,
    %c0_34 = arith.constant 0 : index
    %c48_35 = arith.constant 48 : index
    %28 = vector.load %arg8[%c0_34, %c48_35] : memref<16x384xbf16, #tpu.memory_space<vmem>>, vector<16x256xbf16>
    %c192 = arith.constant 192 : index
    %c0_36 = arith.constant 0 : index
    %29 = vector.load %arg9[%c192, %c0_36] : memref<256x256xbf16, #tpu.memory_space<vmem>>, vector<16x256xbf16>
    tpu.vector_store %arg9[%c192, %c0_36], %28 {strides = array<i32>} : memref<256x256xbf16, #tpu.memory_space<vmem>>, vector<16x256xbf16>,
    %c0_37 = arith.constant 0 : index
    %c49 = arith.constant 49 : index
    %30 = vector.load %arg8[%c0_37, %c49] : memref<16x384xbf16, #tpu.memory_space<vmem>>, vector<16x256xbf16>
    %c208 = arith.constant 208 : index
    %c0_38 = arith.constant 0 : index
    %31 = vector.load %arg9[%c208, %c0_38] : memref<256x256xbf16, #tpu.memory_space<vmem>>, vector<16x256xbf16>
    tpu.vector_store %arg9[%c208, %c0_38], %30 {strides = array<i32>} : memref<256x256xbf16, #tpu.memory_space<vmem>>, vector<16x256xbf16>,
    %c0_39 = arith.constant 0 : index
    %c50 = arith.constant 50 : index
    %32 = vector.load %arg8[%c0_39, %c50] : memref<16x384xbf16, #tpu.memory_space<vmem>>, vector<16x256xbf16>
    %c224 = arith.constant 224 : index
    %c0_40 = arith.constant 0 : index
    %33 = vector.load %arg9[%c224, %c0_40] : memref<256x256xbf16, #tpu.memory_space<vmem>>, vector<16x256xbf16>
    tpu.vector_store %arg9[%c224, %c0_40], %32 {strides = array<i32>} : memref<256x256xbf16, #tpu.memory_space<vmem>>, vector<16x256xbf16>,
    %c0_41 = arith.constant 0 : index
    %c51 = arith.constant 51 : index
    %34 = vector.load %arg8[%c0_41, %c51] : memref<16x384xbf16, #tpu.memory_space<vmem>>, vector<16x256xbf16>
    %c240 = arith.constant 240 : index
    %c0_42 = arith.constant 0 : index
    %35 = vector.load %arg9[%c240, %c0_42] : memref<256x256xbf16, #tpu.memory_space<vmem>>, vector<16x256xbf16>
    tpu.vector_store %arg9[%c240, %c0_42], %34 {strides = array<i32>} : memref<256x256xbf16, #tpu.memory_space<vmem>>, vector<16x256xbf16>,
    %c0_43 = arith.constant 0 : index
    %c0_44 = arith.constant 0 : index
    %36 = vector.load %arg3[%c0_43, %c0_44] : memref<20x256xbf16, #tpu.memory_space<vmem>>, vector<20x256xbf16>
    %c0_45 = arith.constant 0 : index
    %c0_46 = arith.constant 0 : index
    %37 = vector.load %arg9[%c0_45, %c0_46] : memref<256x256xbf16, #tpu.memory_space<vmem>>, vector<256x256xbf16>
    %cst = arith.constant dense<0.000000e+00> : vector<20x256xf32>
    %38 = tpu.matmul %36, %37, %cst {dimension_numbers = #tpu.dot_dimension_numbers<[1], [0], [0], [1], [0, 0, 1, 1], [], []>} : vector<20x256xbf16>, vector<256x256xbf16>, vector<20x256xf32> -> vector<20x256xf32>
    %c0_47 = arith.constant 0 : index
    %c0_48 = arith.constant 0 : index
    %39 = vector.load %arg4[%c0_47, %c0_48] : memref<20x1xf32, #tpu.memory_space<vmem>>, vector<20x1xf32>
    %40 = vector.broadcast %39 : vector<20x1xf32> to vector<20x256xf32>
    %41 = arith.addf %38, %40 : vector<20x256xf32>
    %cst_49 = arith.constant 0.000000e+00 : f32
    %42 = vector.broadcast %cst_49 : f32 to vector<20x256xf32>
    %43 = arith.maximumf %41, %42 : vector<20x256xf32>
    %44 = arith.truncf %43 : vector<20x256xf32> to vector<20x256xbf16>
    %c0_50 = arith.constant 0 : index
    %c0_51 = arith.constant 0 : index
    %45 = vector.load %arg5[%c0_50, %c0_51] : memref<20x20xbf16, #tpu.memory_space<vmem>>, vector<20x20xbf16>
    %cst_52 = arith.constant dense<0.000000e+00> : vector<20x256xf32>
    %46 = tpu.matmul %45, %44, %cst_52 {dimension_numbers = #tpu.dot_dimension_numbers<[1], [0], [0], [1], [0, 0, 1, 1], [], []>} : vector<20x20xbf16>, vector<20x256xbf16>, vector<20x256xf32> -> vector<20x256xf32>
    %c0_53 = arith.constant 0 : index
    %c0_54 = arith.constant 0 : index
    %47 = vector.load %arg6[%c0_53, %c0_54] : memref<20x1xf32, #tpu.memory_space<vmem>>, vector<20x1xf32>
    %48 = vector.broadcast %47 : vector<20x1xf32> to vector<20x256xf32>
    %49 = arith.addf %46, %48 : vector<20x256xf32>
    %50 = math.tanh %49 : vector<20x256xf32>
    %51 = arith.truncf %50 : vector<20x256xf32> to vector<20x256xbf16>
    %c0_55 = arith.constant 0 : index
    %c0_56 = arith.constant 0 : index
    %52 = vector.load %arg7[%c0_55, %c0_56] : memref<20x256xbf16, #tpu.memory_space<vmem>>, vector<20x256xbf16>
    tpu.vector_store %arg7[%c0_55, %c0_56], %51 {strides = array<i32>} : memref<20x256xbf16, #tpu.memory_space<vmem>>, vector<20x256xbf16>,
    return
  }
  func.func @transform_0(%arg0: i32) -> (i32, i32) {
    %c0_i32 = arith.constant 0 : i32
    %c0_i32_0 = arith.constant 0 : i32
    return %c0_i32, %arg0 : i32, i32
  }
  func.func @transform_1(%arg0: i32) -> (i32, i32) {
    %c1_i32 = arith.constant 1 : i32
    %0 = arith.addi %arg0, %c1_i32 : i32
    %c2_i32 = arith.constant 2 : i32
    %1 = arith.muli %0, %c2_i32 : i32
    %c0_i32 = arith.constant 0 : i32
    %c0_i32_0 = arith.constant 0 : i32
    return %c0_i32, %1 : i32, i32
  }
  func.func @transform_2(%arg0: i32) -> (i32, i32) {
    %c0_i32 = arith.constant 0 : i32
    %c0_i32_0 = arith.constant 0 : i32
    %c0_i32_1 = arith.constant 0 : i32
    return %c0_i32, %c0_i32_0 : i32, i32
  }
  func.func @transform_3(%arg0: i32) -> (i32, i32) {
    %c0_i32 = arith.constant 0 : i32
    %c0_i32_0 = arith.constant 0 : i32
    %c0_i32_1 = arith.constant 0 : i32
    return %c0_i32, %c0_i32_0 : i32, i32
  }
  func.func @transform_4(%arg0: i32) -> (i32, i32) {
    %c0_i32 = arith.constant 0 : i32
    %c0_i32_0 = arith.constant 0 : i32
    %c0_i32_1 = arith.constant 0 : i32
    return %c0_i32, %c0_i32_0 : i32, i32
  }
  func.func @transform_5(%arg0: i32) -> (i32, i32) {
    %c0_i32 = arith.constant 0 : i32
    %c0_i32_0 = arith.constant 0 : i32
    %c0_i32_1 = arith.constant 0 : i32
    return %c0_i32, %c0_i32_0 : i32, i32
  }
  func.func @transform_6(%arg0: i32) -> (i32, i32) {
    %c0_i32 = arith.constant 0 : i32
    %c0_i32_0 = arith.constant 0 : i32
    return %c0_i32, %arg0 : i32, i32
  }
}

</mosaic_0001>

<llo_original>
// kernel: model_tanh_forward.1
$region0: #{model_tanh_forward.1}
  #allocation0 [shape = 'u32[]', space=smem, size = 0x4, offset = 0x4, fixed_abs, tag = 'smem constant byte address 0x4 - core index']
  #allocation1 [shape = 'u32[144,128]{1,0:T(1,128)}', space=vmem, size = 0x12000, scoped, tag = 'internal scratch']
  #allocation2 [shape = 'bf16[16,384]{1,0:T(16,128)(2,1)}', space=vmem, size = 0x3000, scoped, tag = 'scratch operand']
  #allocation3 [shape = 'bf16[256,256]{1,0:T(16,128)(2,1)}', space=vmem, size = 0x20000, scoped, tag = 'scratch operand']
  %s0 = inlined_call_operand.vmem [shape: bf16[16,640], index: 0, kind: input, shape index: {}, may-alias: {0,1}]
  %s1 = inlined_call_operand.vmem [shape: bf16[16,640], index: 1, kind: input, shape index: {}, may-alias: {0,1}]
  %s2 = inlined_call_operand.vmem [shape: bf16[20,256], index: 2, kind: input, shape index: {}]
  %s3 = inlined_call_operand.vmem [shape: f32[20,1], index: 3, kind: input, shape index: {}]
  %s4 = inlined_call_operand.vmem [shape: bf16[20,20], index: 4, kind: input, shape index: {}]
  %s5 = inlined_call_operand.vmem [shape: f32[20,1], index: 5, kind: input, shape index: {}]
  %s6 = inlined_call_operand.vmem [shape: bf16[20,512], index: 6, kind: output, shape index: {}]
  %s7 = sld [smem:[#allocation0]]
  $region198: #{model_tanh_forward.1} parent=0
    _
  %s9 = ssub.s32 1, %s7
  %s10 = scalar_select 0, %s9, %s7
  $region1: #{model_tanh_forward.1} parent=0
    #allocation4 [shape = 'u8[16384]{0}', space=vmem, size = 0x4000, scoped, tag = 'input window, operand 0']
    #allocation5 [shape = 'u8[8192]{0}', space=vmem, size = 0x2000, scoped, tag = 'input window, operand 1']
    #allocation6 [shape = 'u8[24576]{0}', space=vmem, size = 0x6000, scoped, tag = 'output window, operand 0']
    loop: start=0, step=1, limit=4
    $region2: #{model_tanh_forward.1} parent=1 // loop_pre_header
      _
    $region3: #{model_tanh_forward.1} parent=1 // loop_header
      %s12 = sphi 0, %s16
      %p13 = scmp.ge.s32.totalorder %s12, 4
      %s22 = sphi 0, %s24
      %s25 = sphi 0, %s22
      %s26 = sphi 0, %s25
      %s42 = sphi 0, %s26
      %s52 = sphi 0, %s54
      %s55 = sphi 0, %s52
      %s56 = sphi 0, %s55
      %s72 = sphi 0, %s56
      %s76 = sphi 0, %s76
      %s78 = sphi 0, %s76
      %s79 = sphi 0, %s78
      %s93 = sphi 0, %s79
      %s97 = sphi 0, %s97
      %s99 = sphi 0, %s97
      %s100 = sphi 0, %s99
      %s114 = sphi 0, %s100
      %s118 = sphi 0, %s118
      %s120 = sphi 0, %s118
      %s121 = sphi 0, %s120
      %s135 = sphi 0, %s121
      %s139 = sphi 0, %s139
      %s141 = sphi 0, %s139
      %s142 = sphi 0, %s141
      %s156 = sphi 0, %s142
      %s162 = sphi 0, %s164
      %s165 = sphi 0, %s162
      %s166 = sphi 0, %s165
      %s182 = sphi 0, %s166
    $region4: #{model_tanh_forward.1} parent=1 // loop_header_branch
      %15 = sbr.rel (%p13) target = $region8
    $region5: #{model_tanh_forward.1} parent=1 // loop_body
      %s17 = ssub.s32 %s12, 1
      %s18 = ssub.s32 %s12, 2
      %s19 = sadd.s32 %s12, 1
      %s20 = ssub.s32 %s12, %s19
      %p21 = scmp.eq.s32.totalorder %s20, 0
      %s23 = sadd.s32 %s22, 1
      %s24 = scalar_select %p21, %s22, %s23
      %p27 = pneg %p21
      %p28 = scmp.eq.s32.totalorder %s12, 1
      %p29 = por %p27, %p28
      %p30 = scmp.ne.s32.totalorder %s22, %s25
      %p31 = scmp.eq.s32.totalorder %s12, 0
      %p32 = por %p30, %p31
      %p33 = scmp.ne.s32.totalorder %s22, %s25
      %p34 = scmp.eq.s32.totalorder %s17, 1
      %p35 = por %p33, %p34
      %p36 = scmp.ne.s32.totalorder %s25, %s26
      %p37 = scmp.eq.s32.totalorder %s17, 0
      %p38 = por %p36, %p37
      %p39 = scmp.ne.s32.totalorder %s25, %s26
      %p40 = scmp.eq.s32.totalorder %s18, 1
      %p41 = por %p39, %p40
      %p43 = scmp.ne.s32.totalorder %s26, %s42
      %p44 = scmp.eq.s32.totalorder %s18, 0
      %p45 = por %p43, %p44
      %s46 = sadd.s32 %s12, 1
      %s47 = smul.u32 %s46, 2
      %s48 = sadd.s32 %s19, 1
      %s49 = smul.u32 %s48, 2
      %s50 = ssub.s32 %s47, %s49
      %p51 = scmp.eq.s32.totalorder %s50, 0
      %s53 = sadd.s32 %s52, 1
      %s54 = scalar_select %p51, %s52, %s53
      %p57 = pneg %p51
      %p58 = scmp.eq.s32.totalorder %s12, 1
      %p59 = por %p57, %p58
      %p60 = scmp.ne.s32.totalorder %s52, %s55
      %p61 = scmp.eq.s32.totalorder %s12, 0
      %p62 = por %p60, %p61
      %p63 = scmp.ne.s32.totalorder %s52, %s55
      %p64 = scmp.eq.s32.totalorder %s17, 1
      %p65 = por %p63, %p64
      %p66 = scmp.ne.s32.totalorder %s55, %s56
      %p67 = scmp.eq.s32.totalorder %s17, 0
      %p68 = por %p66, %p67
      %p69 = scmp.ne.s32.totalorder %s55, %s56
      %p70 = scmp.eq.s32.totalorder %s18, 1
      %p71 = por %p69, %p70
      %p73 = scmp.ne.s32.totalorder %s56, %s72
      %p74 = scmp.eq.s32.totalorder %s18, 0
      %p75 = por %p73, %p74
      %s77 = sadd.s32 %s76, 1
      %p80 = scmp.eq.s32.totalorder %s12, 1
      %p81 = scmp.ne.s32.totalorder %s76, %s78
      %p82 = scmp.eq.s32.totalorder %s12, 0
      %p83 = por %p81, %p82
      %p84 = scmp.ne.s32.totalorder %s76, %s78
      %p85 = scmp.eq.s32.totalorder %s17, 1
      %p86 = por %p84, %p85
      %p87 = scmp.ne.s32.totalorder %s78, %s79
      %p88 = scmp.eq.s32.totalorder %s17, 0
      %p89 = por %p87, %p88
      %p90 = scmp.ne.s32.totalorder %s78, %s79
      %p91 = scmp.eq.s32.totalorder %s18, 1
      %p92 = por %p90, %p91
      %p94 = scmp.ne.s32.totalorder %s79, %s93
      %p95 = scmp.eq.s32.totalorder %s18, 0
      %p96 = por %p94, %p95
      %s98 = sadd.s32 %s97, 1
      %p101 = scmp.eq.s32.totalorder %s12, 1
      %p102 = scmp.ne.s32.totalorder %s97, %s99
      %p103 = scmp.eq.s32.totalorder %s12, 0
      %p104 = por %p102, %p103
      %p105 = scmp.ne.s32.totalorder %s97, %s99
      %p106 = scmp.eq.s32.totalorder %s17, 1
      %p107 = por %p105, %p106
      %p108 = scmp.ne.s32.totalorder %s99, %s100
      %p109 = scmp.eq.s32.totalorder %s17, 0
      %p110 = por %p108, %p109
      %p111 = scmp.ne.s32.totalorder %s99, %s100
      %p112 = scmp.eq.s32.totalorder %s18, 1
      %p113 = por %p111, %p112
      %p115 = scmp.ne.s32.totalorder %s100, %s114
      %p116 = scmp.eq.s32.totalorder %s18, 0
      %p117 = por %p115, %p116
      %s119 = sadd.s32 %s118, 1
      %p122 = scmp.eq.s32.totalorder %s12, 1
      %p123 = scmp.ne.s32.totalorder %s118, %s120
      %p124 = scmp.eq.s32.totalorder %s12, 0
      %p125 = por %p123, %p124
      %p126 = scmp.ne.s32.totalorder %s118, %s120
      %p127 = scmp.eq.s32.totalorder %s17, 1
      %p128 = por %p126, %p127
      %p129 = scmp.ne.s32.totalorder %s120, %s121
      %p130 = scmp.eq.s32.totalorder %s17, 0
      %p131 = por %p129, %p130
      %p132 = scmp.ne.s32.totalorder %s120, %s121
      %p133 = scmp.eq.s32.totalorder %s18, 1
      %p134 = por %p132, %p133
      %p136 = scmp.ne.s32.totalorder %s121, %s135
      %p137 = scmp.eq.s32.totalorder %s18, 0
      %p138 = por %p136, %p137
      %s140 = sadd.s32 %s139, 1
      %p143 = scmp.eq.s32.totalorder %s12, 1
      %p144 = scmp.ne.s32.totalorder %s139, %s141
      %p145 = scmp.eq.s32.totalorder %s12, 0
      %p146 = por %p144, %p145
      %p147 = scmp.ne.s32.totalorder %s139, %s141
      %p148 = scmp.eq.s32.totalorder %s17, 1
      %p149 = por %p147, %p148
      %p150 = scmp.ne.s32.totalorder %s141, %s142
      %p151 = scmp.eq.s32.totalorder %s17, 0
      %p152 = por %p150, %p151
      %p153 = scmp.ne.s32.totalorder %s141, %s142
      %p154 = scmp.eq.s32.totalorder %s18, 1
      %p155 = por %p153, %p154
      %p157 = scmp.ne.s32.totalorder %s142, %s156
      %p158 = scmp.eq.s32.totalorder %s18, 0
      %p159 = por %p157, %p158
      %s160 = ssub.s32 %s12, %s19
      %p161 = scmp.eq.s32.totalorder %s160, 0
      %s163 = sadd.s32 %s162, 1
      %s164 = scalar_select %p161, %s162, %s163
      %p167 = pneg %p161
      %p168 = scmp.eq.s32.totalorder %s12, 1
      %p169 = por %p167, %p168
      %p170 = scmp.ne.s32.totalorder %s162, %s165
      %p171 = scmp.eq.s32.totalorder %s12, 0
      %p172 = por %p170, %p171
      %p173 = scmp.ne.s32.totalorder %s162, %s165
      %p174 = scmp.eq.s32.totalorder %s17, 1
      %p175 = por %p173, %p174
      %p176 = scmp.ne.s32.totalorder %s165, %s166
      %p177 = scmp.eq.s32.totalorder %s17, 0
      %p178 = por %p176, %p177
      %p179 = scmp.ne.s32.totalorder %s165, %s166
      %p180 = scmp.eq.s32.totalorder %s18, 1
      %p181 = por %p179, %p180
      %p183 = scmp.ne.s32.totalorder %s166, %s182
      %p184 = scmp.eq.s32.totalorder %s18, 0
      %p185 = por %p183, %p184
      %p186 = scmp.le.s32.totalorder 1, %s12
      %p187 = scmp.lt.s32.totalorder %s12, 3
      %p188 = pnand %p186, %p187
      %p189 = pneg %p188
      // Predicated region
      $region9: #{model_tanh_forward.1} parent=5 // pred_check
        _
      $region10: #{model_tanh_forward.1} parent=5 // pred_check_branch
        %191 = sbr.rel (%p188) target = $region12
      $region11: #{model_tanh_forward.1} parent=5 // pred_region
        %s192 = ssub.s32 %s12, 1
        // Predicated region
        $region13: #{model_tanh_forward.1} parent=11 // pred_check
          %p193 = pneg %p89
        $region14: #{model_tanh_forward.1} parent=11 // pred_check_branch
          %195 = sbr.rel (%p193) target = $region16
        $region15: #{model_tanh_forward.1} parent=11 // pred_region
          _
        $region16: #{model_tanh_forward.1} parent=11 // pred_fallthru
          _
        // Predicated region
        $region17: #{model_tanh_forward.1} parent=11 // pred_check
          %p196 = pneg %p110
        $region18: #{model_tanh_forward.1} parent=11 // pred_check_branch
          %198 = sbr.rel (%p196) target = $region20
        $region19: #{model_tanh_forward.1} parent=11 // pred_region
          _
        $region20: #{model_tanh_forward.1} parent=11 // pred_fallthru
          _
        // Predicated region
        $region21: #{model_tanh_forward.1} parent=11 // pred_check
          %p199 = pneg %p131
        $region22: #{model_tanh_forward.1} parent=11 // pred_check_branch
          %201 = sbr.rel (%p199) target = $region24
        $region23: #{model_tanh_forward.1} parent=11 // pred_region
          _
        $region24: #{model_tanh_forward.1} parent=11 // pred_fallthru
          _
        // Predicated region
        $region25: #{model_tanh_forward.1} parent=11 // pred_check
          %p202 = pneg %p152
        $region26: #{model_tanh_forward.1} parent=11 // pred_check_branch
          %204 = sbr.rel (%p202) target = $region28
        $region27: #{model_tanh_forward.1} parent=11 // pred_region
          _
        $region28: #{model_tanh_forward.1} parent=11 // pred_fallthru
          _
      $region12: #{model_tanh_forward.1} parent=5 // pred_fallthru
        _
      %p205 = scmp.lt.s32.totalorder %s12, 2
      // Predicated region
      $region29: #{model_tanh_forward.1} parent=5 // pred_check
        %p206 = pneg %p205
      $region30: #{model_tanh_forward.1} parent=5 // pred_check_branch
        %208 = sbr.rel (%p206) target = $region32
      $region31: #{model_tanh_forward.1} parent=5 // pred_region
        // Predicated region
        $region33: #{model_tanh_forward.1} parent=31 // pred_check
          %p209 = pneg %p32
        $region34: #{model_tanh_forward.1} parent=31 // pred_check_branch
          %211 = sbr.rel (%p209) target = $region36
        $region35: #{model_tanh_forward.1} parent=31 // pred_region
          %s212 = sand.u32 %s22, 1
          %s213 = sand.u32 %s22, 1
          %s214 = smul.addr %s213, 16
          %s215 = scalar_lea.vmem [#allocation4], %s214
          %s216 = smul.u32 2, %s12
          %s217 = ssub.s32 5, %s216
          %p218 = scmp.lt.s32.totalorder %s217, 2
          %s219 = scalar_select %p218, %s217, 2
          %s220 = smul.u32 128, %s219
          %p221 = scmp.ne.s32.totalorder 0, %s220
          %s222 = smul.addr %s216, 4
          %s223 = scalar_lea.vmem %s0, %s222
          %s224 = smul.u32 %s219, 4
          // Predicated region
          $region37: #{model_tanh_forward.1} parent=35 // pred_check
            %p225 = pneg %p221
          $region38: #{model_tanh_forward.1} parent=35 // pred_check_branch
            %227 = sbr.rel (%p225) target = $region40
          $region39: #{model_tanh_forward.1} parent=35 // pred_region
            %p228 = scmp.lt.u32.totalorder %s224, 8
            %p229 = pneg %p228
            // Predicated region
            $region41: #{model_tanh_forward.1} parent=39 // pred_check
              _
            $region42: #{model_tanh_forward.1} parent=39 // pred_check_branch
              %231 = sbr.rel (%p228) target = $region44
            $region43: #{model_tanh_forward.1} parent=39 // pred_region
              %s248 = sand.u32 %s224, 7
              %p249 = scmp.eq.s32.totalorder %s248, 0
              // Predicated region
              $region56: #{model_tanh_forward.1} parent=43 // pred_check
                %p250 = pneg %p249
              $region57: #{model_tanh_forward.1} parent=43 // pred_check_branch
                %252 = sbr.rel (%p250) target = $region59
              $region58: #{model_tanh_forward.1} parent=43 // pred_region
                %s253 = sshrl.u32 %s224, 3
                %s254 = sshrl.u32 %s253, 5
                // While loop
                $region60: #{model_tanh_forward.1} parent=58 // loop_pre_header
                  _
                $region61: #{model_tanh_forward.1} parent=58 // loop_header
                  %s258 = sphi 0, %s260
                  %p259 = scmp.ge.s32.totalorder %s258, %s254
                  %s263 = sphi 0, %s396
                  %s264 = sphi %s223, %s399
                  %s265 = sphi %s215, %s400
                $region62: #{model_tanh_forward.1} parent=58 // loop_header_branch
                  %262 = sbr.rel (%p259) target = $region66
                $region63: #{model_tanh_forward.1} parent=58 // loop_body
                  %v266 = vld [vmem:[%s264] sm:$0xff]
                  %267 = vst [vmem:[%s265] sm:$0xff] %v266
                  %v268 = vld [vmem:[%s264 + $0x8] sm:$0xff]
                  %269 = vst [vmem:[%s265 + $0x8] sm:$0xff] %v268
                  %v270 = vld [vmem:[%s264 + $0x10] sm:$0xff]
                  %271 = vst [vmem:[%s265 + $0x10] sm:$0xff] %v270
                  %v272 = vld [vmem:[%s264 + $0x18] sm:$0xff]
                  %273 = vst [vmem:[%s265 + $0x18] sm:$0xff] %v272
                  %v274 = vld [vmem:[%s264 + $0x20] sm:$0xff]
                  %275 = vst [vmem:[%s265 + $0x20] sm:$0xff] %v274
                  %v276 = vld [vmem:[%s264 + $0x28] sm:$0xff]
                  %277 = vst [vmem:[%s265 + $0x28] sm:$0xff] %v276
                  %v278 = vld [vmem:[%s264 + $0x30] sm:$0xff]
                  %279 = vst [vmem:[%s265 + $0x30] sm:$0xff] %v278
                  %v280 = vld [vmem:[%s264 + $0x38] sm:$0xff]
                  %281 = vst [vmem:[%s265 + $0x38] sm:$0xff] %v280
                  %v282 = vld [vmem:[%s264 + $0x40] sm:$0xff]
                  %283 = vst [vmem:[%s265 + $0x40] sm:$0xff] %v282
                  %v284 = vld [vmem:[%s264 + $0x48] sm:$0xff]
                  %285 = vst [vmem:[%s265 + $0x48] sm:$0xff] %v284
                  %v286 = vld [vmem:[%s264 + $0x50] sm:$0xff]
                  %287 = vst [vmem:[%s265 + $0x50] sm:$0xff] %v286
                  %v288 = vld [vmem:[%s264 + $0x58] sm:$0xff]
                  %289 = vst [vmem:[%s265 + $0x58] sm:$0xff] %v288
                  %v290 = vld [vmem:[%s264 + $0x60] sm:$0xff]
                  %291 = vst [vmem:[%s265 + $0x60] sm:$0xff] %v290
                  %v292 = vld [vmem:[%s264 + $0x68] sm:$0xff]
                  %293 = vst [vmem:[%s265 + $0x68] sm:$0xff] %v292
                  %v294 = vld [vmem:[%s264 + $0x70] sm:$0xff]
                  %295 = vst [vmem:[%s265 + $0x70] sm:$0xff] %v294
                  %v296 = vld [vmem:[%s264 + $0x78] sm:$0xff]
                  %297 = vst [vmem:[%s265 + $0x78] sm:$0xff] %v296
                  %v298 = vld [vmem:[%s264 + $0x80] sm:$0xff]
                  %299 = vst [vmem:[%s265 + $0x80] sm:$0xff] %v298
                  %v300 = vld [vmem:[%s264 + $0x88] sm:$0xff]
                  %301 = vst [vmem:[%s265 + $0x88] sm:$0xff] %v300
                  %v302 = vld [vmem:[%s264 + $0x90] sm:$0xff]
                  %303 = vst [vmem:[%s265 + $0x90] sm:$0xff] %v302
                  %v304 = vld [vmem:[%s264 + $0x98] sm:$0xff]
                  %305 = vst [vmem:[%s265 + $0x98] sm:$0xff] %v304
                  %v306 = vld [vmem:[%s264 + $0xa0] sm:$0xff]
                  %307 = vst [vmem:[%s265 + $0xa0] sm:$0xff] %v306
                  %v308 = vld [vmem:[%s264 + $0xa8] sm:$0xff]
                  %309 = vst [vmem:[%s265 + $0xa8] sm:$0xff] %v308
                  %v310 = vld [vmem:[%s264 + $0xb0] sm:$0xff]
                  %311 = vst [vmem:[%s265 + $0xb0] sm:$0xff] %v310
                  %v312 = vld [vmem:[%s264 + $0xb8] sm:$0xff]
                  %313 = vst [vmem:[%s265 + $0xb8] sm:$0xff] %v312
                  %v314 = vld [vmem:[%s264 + $0xc0] sm:$0xff]
                  %315 = vst [vmem:[%s265 + $0xc0] sm:$0xff] %v314
                  %v316 = vld [vmem:[%s264 + $0xc8] sm:$0xff]
                  %317 = vst [vmem:[%s265 + $0xc8] sm:$0xff] %v316
                  %v318 = vld [vmem:[%s264 + $0xd0] sm:$0xff]
                  %319 = vst [vmem:[%s265 + $0xd0] sm:$0xff] %v318
                  %v320 = vld [vmem:[%s264 + $0xd8] sm:$0xff]
                  %321 = vst [vmem:[%s265 + $0xd8] sm:$0xff] %v320
                  %v322 = vld [vmem:[%s264 + $0xe0] sm:$0xff]
                  %323 = vst [vmem:[%s265 + $0xe0] sm:$0xff] %v322
                  %v324 = vld [vmem:[%s264 + $0xe8] sm:$0xff]
                  %325 = vst [vmem:[%s265 + $0xe8] sm:$0xff] %v324
                  %v326 = vld [vmem:[%s264 + $0xf0] sm:$0xff]
                  %327 = vst [vmem:[%s265 + $0xf0] sm:$0xff] %v326
                  %v328 = vld [vmem:[%s264 + $0xf8] sm:$0xff]
                  %329 = vst [vmem:[%s265 + $0xf8] sm:$0xff] %v328
                  %v330 = vld [vmem:[%s264 + $0x14] sm:$0xff]
                  %331 = vst [vmem:[%s265 + $0x8] sm:$0xff] %v330
                  %v332 = vld [vmem:[%s264 + $0x1c] sm:$0xff]
                  %333 = vst [vmem:[%s265 + $0x10] sm:$0xff] %v332
                  %v334 = vld [vmem:[%s264 + $0x24] sm:$0xff]
                  %335 = vst [vmem:[%s265 + $0x18] sm:$0xff] %v334
                  %v336 = vld [vmem:[%s264 + $0x2c] sm:$0xff]
                  %337 = vst [vmem:[%s265 + $0x20] sm:$0xff] %v336
                  %v338 = vld [vmem:[%s264 + $0x34] sm:$0xff]
                  %339 = vst [vmem:[%s265 + $0x28] sm:$0xff] %v338
                  %v340 = vld [vmem:[%s264 + $0x3c] sm:$0xff]
                  %341 = vst [vmem:[%s265 + $0x30] sm:$0xff] %v340
                  %v342 = vld [vmem:[%s264 + $0x44] sm:$0xff]
                  %343 = vst [vmem:[%s265 + $0x38] sm:$0xff] %v342
                  %v344 = vld [vmem:[%s264 + $0x4c] sm:$0xff]
                  %345 = vst [vmem:[%s265 + $0x40] sm:$0xff] %v344
                  %v346 = vld [vmem:[%s264 + $0x54] sm:$0xff]
                  %347 = vst [vmem:[%s265 + $0x48] sm:$0xff] %v346
                  %v348 = vld [vmem:[%s264 + $0x5c] sm:$0xff]
                  %349 = vst [vmem:[%s265 + $0x50] sm:$0xff] %v348
                  %v350 = vld [vmem:[%s264 + $0x64] sm:$0xff]
                  %351 = vst [vmem:[%s265 + $0x58] sm:$0xff] %v350
                  %v352 = vld [vmem:[%s264 + $0x6c] sm:$0xff]
                  %353 = vst [vmem:[%s265 + $0x60] sm:$0xff] %v352
                  %v354 = vld [vmem:[%s264 + $0x74] sm:$0xff]
                  %355 = vst [vmem:[%s265 + $0x68] sm:$0xff] %v354
                  %v356 = vld [vmem:[%s264 + $0x7c] sm:$0xff]
                  %357 = vst [vmem:[%s265 + $0x70] sm:$0xff] %v356
                  %v358 = vld [vmem:[%s264 + $0x84] sm:$0xff]
                  %359 = vst [vmem:[%s265 + $0x78] sm:$0xff] %v358
                  %v360 = vld [vmem:[%s264 + $0x8c] sm:$0xff]
                  %361 = vst [vmem:[%s265 + $0x80] sm:$0xff] %v360
                  %v362 = vld [vmem:[%s264 + $0x94] sm:$0xff]
                  %363 = vst [vmem:[%s265 + $0x88] sm:$0xff] %v362
                  %v364 = vld [vmem:[%s264 + $0x9c] sm:$0xff]
                  %365 = vst [vmem:[%s265 + $0x90] sm:$0xff] %v364
                  %v366 = vld [vmem:[%s264 + $0xa4] sm:$0xff]
                  %367 = vst [vmem:[%s265 + $0x98] sm:$0xff] %v366
                  %v368 = vld [vmem:[%s264 + $0xac] sm:$0xff]
                  %369 = vst [vmem:[%s265 + $0xa0] sm:$0xff] %v368
                  %v370 = vld [vmem:[%s264 + $0xb4] sm:$0xff]
                  %371 = vst [vmem:[%s265 + $0xa8] sm:$0xff] %v370
                  %v372 = vld [vmem:[%s264 + $0xbc] sm:$0xff]
                  %373 = vst [vmem:[%s265 + $0xb0] sm:$0xff] %v372
                  %v374 = vld [vmem:[%s264 + $0xc4] sm:$0xff]
                  %375 = vst [vmem:[%s265 + $0xb8] sm:$0xff] %v374
                  %v376 = vld [vmem:[%s264 + $0xcc] sm:$0xff]
                  %377 = vst [vmem:[%s265 + $0xc0] sm:$0xff] %v376
                  %v378 = vld [vmem:[%s264 + $0xd4] sm:$0xff]
                  %379 = vst [vmem:[%s265 + $0xc8] sm:$0xff] %v378
                  %v380 = vld [vmem:[%s264 + $0xdc] sm:$0xff]
                  %381 = vst [vmem:[%s265 + $0xd0] sm:$0xff] %v380
                  %v382 = vld [vmem:[%s264 + $0xe4] sm:$0xff]
                  %383 = vst [vmem:[%s265 + $0xd8] sm:$0xff] %v382
                  %v384 = vld [vmem:[%s264 + $0xec] sm:$0xff]
                  %385 = vst [vmem:[%s265 + $0xe0] sm:$0xff] %v384
                  %v386 = vld [vmem:[%s264 + $0xf4] sm:$0xff]
                  %387 = vst [vmem:[%s265 + $0xe8] sm:$0xff] %v386
                  %v388 = vld [vmem:[%s264 + $0xfc] sm:$0xff]
                  %389 = vst [vmem:[%s265 + $0xf0] sm:$0xff] %v388
                  %v390 = vld [vmem:[%s264 + $0x104] sm:$0xff]
                  %391 = vst [vmem:[%s265 + $0xf8] sm:$0xff] %v390
                  %v392 = vld [vmem:[%s264 + $0x10c] sm:$0xff]
                  %393 = vst [vmem:[%s265 + $0x100] sm:$0xff] %v392
                  %s394 = sadd.s32 1, %s263
                  %p395 = scmp.ge.s32.totalorder %s394, %s254
                  %s396 = scalar_select %p395, 0, %s394
                  %s397 = smul.u32 %s396, 256
                  %s398 = smul.u32 %s396, 256
                  %s399 = scalar_lea.vmem %s223, %s397
                  %s400 = scalar_lea.vmem %s215, %s398 [#allocation4]
                $region64: #{model_tanh_forward.1} parent=58 // loop_footer
                  %s260 = sadd.s32 %s258, 1
                $region65: #{model_tanh_forward.1} parent=58 // loop_footer_branch
                  %257 = sbr.rel target = $region61
                $region66: #{model_tanh_forward.1} parent=58 // loop_exit
                  _
                %s401 = sshrl.u32 %s253, 5
                %s402 = sand.u32 %s253, 31
                %s403 = smul.u32 %s401, 32
                %s404 = smul.u32 128, %s403
                %s405 = sshra.s32 %s404, 4
                %s406 = scalar_lea.vmem %s223, %s405
                %s407 = smul.u32 128, %s403
                %s408 = sshra.s32 %s407, 4
                %s409 = scalar_lea.vmem %s215, %s408 [#allocation4]
                // While loop
                $region67: #{model_tanh_forward.1} parent=58 // loop_pre_header
                  _
                $region68: #{model_tanh_forward.1} parent=58 // loop_header
                  %s413 = sphi 0, %s415
                  %p414 = scmp.ge.s32.totalorder %s413, %s402
                  %s418 = sphi 0, %s427
                  %s419 = sphi %s406, %s430
                  %s420 = sphi %s409, %s431
                $region69: #{model_tanh_forward.1} parent=58 // loop_header_branch
                  %417 = sbr.rel (%p414) target = $region73
                $region70: #{model_tanh_forward.1} parent=58 // loop_body
                  %v421 = vld [vmem:[%s419] sm:$0xff]
                  %422 = vst [vmem:[%s420] sm:$0xff] %v421
                  %v423 = vld [vmem:[%s419 + $0x14] sm:$0xff]
                  %424 = vst [vmem:[%s420 + $0x8] sm:$0xff] %v423
                  %s425 = sadd.s32 1, %s418
                  %p426 = scmp.ge.s32.totalorder %s425, %s402
                  %s427 = scalar_select %p426, 0, %s425
                  %s428 = smul.u32 %s427, 8
                  %s429 = smul.u32 %s427, 8
                  %s430 = scalar_lea.vmem %s406, %s428
                  %s431 = scalar_lea.vmem %s409, %s429 [#allocation4]
                $region71: #{model_tanh_forward.1} parent=58 // loop_footer
                  %s415 = sadd.s32 %s413, 1
                $region72: #{model_tanh_forward.1} parent=58 // loop_footer_branch
                  %412 = sbr.rel target = $region68
                $region73: #{model_tanh_forward.1} parent=58 // loop_exit
                  _
              $region59: #{model_tanh_forward.1} parent=43 // pred_fallthru
                _
              %p432 = pneg %p249
              // Predicated region
              $region74: #{model_tanh_forward.1} parent=43 // pred_check
                _
              $region75: #{model_tanh_forward.1} parent=43 // pred_check_branch
                %434 = sbr.rel (%p249) target = $region77
              $region76: #{model_tanh_forward.1} parent=43 // pred_region
                %s435 = sand.u32 %s224, 7
                %s436 = ssub.s32 %s224, %s435
                %s437 = scalar_lea.vmem %s223, %s436
                %s438 = ssub.s32 %s224, %s435
                %s439 = scalar_lea.vmem %s215, %s438 [#allocation4]
                %s440 = sshrl.u32 %s224, 3
                %s441 = sshrl.u32 %s440, 5
                // While loop
                $region78: #{model_tanh_forward.1} parent=76 // loop_pre_header
                  _
                $region79: #{model_tanh_forward.1} parent=76 // loop_header
                  %s445 = sphi 0, %s447
                  %p446 = scmp.ge.s32.totalorder %s445, %s441
                  %s450 = sphi 0, %s583
                  %s451 = sphi %s223, %s586
                  %s452 = sphi %s215, %s587
                $region80: #{model_tanh_forward.1} parent=76 // loop_header_branch
                  %449 = sbr.rel (%p446) target = $region84
                $region81: #{model_tanh_forward.1} parent=76 // loop_body
                  %v453 = vld [vmem:[%s451] sm:$0xff]
                  %454 = vst [vmem:[%s452] sm:$0xff] %v453
                  %v455 = vld [vmem:[%s451 + $0x8] sm:$0xff]
                  %456 = vst [vmem:[%s452 + $0x8] sm:$0xff] %v455
                  %v457 = vld [vmem:[%s451 + $0x10] sm:$0xff]
                  %458 = vst [vmem:[%s452 + $0x10] sm:$0xff] %v457
                  %v459 = vld [vmem:[%s451 + $0x18] sm:$0xff]
                  %460 = vst [vmem:[%s452 + $0x18] sm:$0xff] %v459
                  %v461 = vld [vmem:[%s451 + $0x20] sm:$0xff]
                  %462 = vst [vmem:[%s452 + $0x20] sm:$0xff] %v461
                  %v463 = vld [vmem:[%s451 + $0x28] sm:$0xff]
                  %464 = vst [vmem:[%s452 + $0x28] sm:$0xff] %v463
                  %v465 = vld [vmem:[%s451 + $0x30] sm:$0xff]
                  %466 = vst [vmem:[%s452 + $0x30] sm:$0xff] %v465
                  %v467 = vld [vmem:[%s451 + $0x38] sm:$0xff]
                  %468 = vst [vmem:[%s452 + $0x38] sm:$0xff] %v467
                  %v469 = vld [vmem:[%s451 + $0x40] sm:$0xff]
                  %470 = vst [vmem:[%s452 + $0x40] sm:$0xff] %v469
                  %v471 = vld [vmem:[%s451 + $0x48] sm:$0xff]
                  %472 = vst [vmem:[%s452 + $0x48] sm:$0xff] %v471
                  %v473 = vld [vmem:[%s451 + $0x50] sm:$0xff]
                  %474 = vst [vmem:[%s452 + $0x50] sm:$0xff] %v473
                  %v475 = vld [vmem:[%s451 + $0x58] sm:$0xff]
                  %476 = vst [vmem:[%s452 + $0x58] sm:$0xff] %v475
                  %v477 = vld [vmem:[%s451 + $0x60] sm:$0xff]
                  %478 = vst [vmem:[%s452 + $0x60] sm:$0xff] %v477
                  %v479 = vld [vmem:[%s451 + $0x68] sm:$0xff]
                  %480 = vst [vmem:[%s452 + $0x68] sm:$0xff] %v479
                  %v481 = vld [vmem:[%s451 + $0x70] sm:$0xff]
                  %482 = vst [vmem:[%s452 + $0x70] sm:$0xff] %v481
                  %v483 = vld [vmem:[%s451 + $0x78] sm:$0xff]
                  %484 = vst [vmem:[%s452 + $0x78] sm:$0xff] %v483
                  %v485 = vld [vmem:[%s451 + $0x80] sm:$0xff]
                  %486 = vst [vmem:[%s452 + $0x80] sm:$0xff] %v485
                  %v487 = vld [vmem:[%s451 + $0x88] sm:$0xff]
                  %488 = vst [vmem:[%s452 + $0x88] sm:$0xff] %v487
                  %v489 = vld [vmem:[%s451 + $0x90] sm:$0xff]
                  %490 = vst [vmem:[%s452 + $0x90] sm:$0xff] %v489
                  %v491 = vld [vmem:[%s451 + $0x98] sm:$0xff]
                  %492 = vst [vmem:[%s452 + $0x98] sm:$0xff] %v491
                  %v493 = vld [vmem:[%s451 + $0xa0] sm:$0xff]
                  %494 = vst [vmem:[%s452 + $0xa0] sm:$0xff] %v493
                  %v495 = vld [vmem:[%s451 + $0xa8] sm:$0xff]
                  %496 = vst [vmem:[%s452 + $0xa8] sm:$0xff] %v495
                  %v497 = vld [vmem:[%s451 + $0xb0] sm:$0xff]
                  %498 = vst [vmem:[%s452 + $0xb0] sm:$0xff] %v497
                  %v499 = vld [vmem:[%s451 + $0xb8] sm:$0xff]
                  %500 = vst [vmem:[%s452 + $0xb8] sm:$0xff] %v499
                  %v501 = vld [vmem:[%s451 + $0xc0] sm:$0xff]
                  %502 = vst [vmem:[%s452 + $0xc0] sm:$0xff] %v501
                  %v503 = vld [vmem:[%s451 + $0xc8] sm:$0xff]
                  %504 = vst [vmem:[%s452 + $0xc8] sm:$0xff] %v503
                  %v505 = vld [vmem:[%s451 + $0xd0] sm:$0xff]
                  %506 = vst [vmem:[%s452 + $0xd0] sm:$0xff] %v505
                  %v507 = vld [vmem:[%s451 + $0xd8] sm:$0xff]
                  %508 = vst [vmem:[%s452 + $0xd8] sm:$0xff] %v507
                  %v509 = vld [vmem:[%s451 + $0xe0] sm:$0xff]
                  %510 = vst [vmem:[%s452 + $0xe0] sm:$0xff] %v509
                  %v511 = vld [vmem:[%s451 + $0xe8] sm:$0xff]
                  %512 = vst [vmem:[%s452 + $0xe8] sm:$0xff] %v511
                  %v513 = vld [vmem:[%s451 + $0xf0] sm:$0xff]
                  %514 = vst [vmem:[%s452 + $0xf0] sm:$0xff] %v513
                  %v515 = vld [vmem:[%s451 + $0xf8] sm:$0xff]
                  %516 = vst [vmem:[%s452 + $0xf8] sm:$0xff] %v515
                  %v517 = vld [vmem:[%s451 + $0x14] sm:$0xff]
                  %518 = vst [vmem:[%s452 + $0x8] sm:$0xff] %v517
                  %v519 = vld [vmem:[%s451 + $0x1c] sm:$0xff]
                  %520 = vst [vmem:[%s452 + $0x10] sm:$0xff] %v519
                  %v521 = vld [vmem:[%s451 + $0x24] sm:$0xff]
                  %522 = vst [vmem:[%s452 + $0x18] sm:$0xff] %v521
                  %v523 = vld [vmem:[%s451 + $0x2c] sm:$0xff]
                  %524 = vst [vmem:[%s452 + $0x20] sm:$0xff] %v523
                  %v525 = vld [vmem:[%s451 + $0x34] sm:$0xff]
                  %526 = vst [vmem:[%s452 + $0x28] sm:$0xff] %v525
                  %v527 = vld [vmem:[%s451 + $0x3c] sm:$0xff]
                  %528 = vst [vmem:[%s452 + $0x30] sm:$0xff] %v527
                  %v529 = vld [vmem:[%s451 + $0x44] sm:$0xff]
                  %530 = vst [vmem:[%s452 + $0x38] sm:$0xff] %v529
                  %v531 = vld [vmem:[%s451 + $0x4c] sm:$0xff]
                  %532 = vst [vmem:[%s452 + $0x40] sm:$0xff] %v531
                  %v533 = vld [vmem:[%s451 + $0x54] sm:$0xff]
                  %534 = vst [vmem:[%s452 + $0x48] sm:$0xff] %v533
                  %v535 = vld [vmem:[%s451 + $0x5c] sm:$0xff]
                  %536 = vst [vmem:[%s452 + $0x50] sm:$0xff] %v535
                  %v537 = vld [vmem:[%s451 + $0x64] sm:$0xff]
                  %538 = vst [vmem:[%s452 + $0x58] sm:$0xff] %v537
                  %v539 = vld [vmem:[%s451 + $0x6c] sm:$0xff]
                  %540 = vst [vmem:[%s452 + $0x60] sm:$0xff] %v539
                  %v541 = vld [vmem:[%s451 + $0x74] sm:$0xff]
                  %542 = vst [vmem:[%s452 + $0x68] sm:$0xff] %v541
                  %v543 = vld [vmem:[%s451 + $0x7c] sm:$0xff]
                  %544 = vst [vmem:[%s452 + $0x70] sm:$0xff] %v543
                  %v545 = vld [vmem:[%s451 + $0x84] sm:$0xff]
                  %546 = vst [vmem:[%s452 + $0x78] sm:$0xff] %v545
                  %v547 = vld [vmem:[%s451 + $0x8c] sm:$0xff]
                  %548 = vst [vmem:[%s452 + $0x80] sm:$0xff] %v547
                  %v549 = vld [vmem:[%s451 + $0x94] sm:$0xff]
                  %550 = vst [vmem:[%s452 + $0x88] sm:$0xff] %v549
                  %v551 = vld [vmem:[%s451 + $0x9c] sm:$0xff]
                  %552 = vst [vmem:[%s452 + $0x90] sm:$0xff] %v551
                  %v553 = vld [vmem:[%s451 + $0xa4] sm:$0xff]
                  %554 = vst [vmem:[%s452 + $0x98] sm:$0xff] %v553
                  %v555 = vld [vmem:[%s451 + $0xac] sm:$0xff]
                  %556 = vst [vmem:[%s452 + $0xa0] sm:$0xff] %v555
                  %v557 = vld [vmem:[%s451 + $0xb4] sm:$0xff]
                  %558 = vst [vmem:[%s452 + $0xa8] sm:$0xff] %v557
                  %v559 = vld [vmem:[%s451 + $0xbc] sm:$0xff]
                  %560 = vst [vmem:[%s452 + $0xb0] sm:$0xff] %v559
                  %v561 = vld [vmem:[%s451 + $0xc4] sm:$0xff]
                  %562 = vst [vmem:[%s452 + $0xb8] sm:$0xff] %v561
                  %v563 = vld [vmem:[%s451 + $0xcc] sm:$0xff]
                  %564 = vst [vmem:[%s452 + $0xc0] sm:$0xff] %v563
                  %v565 = vld [vmem:[%s451 + $0xd4] sm:$0xff]
                  %566 = vst [vmem:[%s452 + $0xc8] sm:$0xff] %v565
                  %v567 = vld [vmem:[%s451 + $0xdc] sm:$0xff]
                  %568 = vst [vmem:[%s452 + $0xd0] sm:$0xff] %v567
                  %v569 = vld [vmem:[%s451 + $0xe4] sm:$0xff]
                  %570 = vst [vmem:[%s452 + $0xd8] sm:$0xff] %v569
                  %v571 = vld [vmem:[%s451 + $0xec] sm:$0xff]
                  %572 = vst [vmem:[%s452 + $0xe0] sm:$0xff] %v571
                  %v573 = vld [vmem:[%s451 + $0xf4] sm:$0xff]
                  %574 = vst [vmem:[%s452 + $0xe8] sm:$0xff] %v573
                  %v575 = vld [vmem:[%s451 + $0xfc] sm:$0xff]
                  %576 = vst [vmem:[%s452 + $0xf0] sm:$0xff] %v575
                  %v577 = vld [vmem:[%s451 + $0x104] sm:$0xff]
                  %578 = vst [vmem:[%s452 + $0xf8] sm:$0xff] %v577
                  %v579 = vld [vmem:[%s451 + $0x10c] sm:$0xff]
                  %580 = vst [vmem:[%s452 + $0x100] sm:$0xff] %v579
                  %s581 = sadd.s32 1, %s450
                  %p582 = scmp.ge.s32.totalorder %s581, %s441
                  %s583 = scalar_select %p582, 0, %s581
                  %s584 = smul.u32 %s583, 256
                  %s585 = smul.u32 %s583, 256
                  %s586 = scalar_lea.vmem %s223, %s584
                  %s587 = scalar_lea.vmem %s215, %s585 [#allocation4]
                $region82: #{model_tanh_forward.1} parent=76 // loop_footer
                  %s447 = sadd.s32 %s445, 1
                $region83: #{model_tanh_forward.1} parent=76 // loop_footer_branch
                  %444 = sbr.rel target = $region79
                $region84: #{model_tanh_forward.1} parent=76 // loop_exit
                  _
                %s588 = sshrl.u32 %s440, 5
                %s589 = sand.u32 %s440, 31
                %s590 = smul.u32 %s588, 32
                %s591 = smul.u32 128, %s590
                %s592 = sshra.s32 %s591, 4
                %s593 = scalar_lea.vmem %s223, %s592
                %s594 = smul.u32 128, %s590
                %s595 = sshra.s32 %s594, 4
                %s596 = scalar_lea.vmem %s215, %s595 [#allocation4]
                // While loop
                $region85: #{model_tanh_forward.1} parent=76 // loop_pre_header
                  _
                $region86: #{model_tanh_forward.1} parent=76 // loop_header
                  %s600 = sphi 0, %s602
                  %p601 = scmp.ge.s32.totalorder %s600, %s589
                  %s605 = sphi 0, %s614
                  %s606 = sphi %s593, %s617
                  %s607 = sphi %s596, %s618
                $region87: #{model_tanh_forward.1} parent=76 // loop_header_branch
                  %604 = sbr.rel (%p601) target = $region91
                $region88: #{model_tanh_forward.1} parent=76 // loop_body
                  %v608 = vld [vmem:[%s606] sm:$0xff]
                  %609 = vst [vmem:[%s607] sm:$0xff] %v608
                  %v610 = vld [vmem:[%s606 + $0x14] sm:$0xff]
                  %611 = vst [vmem:[%s607 + $0x8] sm:$0xff] %v610
                  %s612 = sadd.s32 1, %s605
                  %p613 = scmp.ge.s32.totalorder %s612, %s589
                  %s614 = scalar_select %p613, 0, %s612
                  %s615 = smul.u32 %s614, 8
                  %s616 = smul.u32 %s614, 8
                  %s617 = scalar_lea.vmem %s593, %s615
                  %s618 = scalar_lea.vmem %s596, %s616 [#allocation4]
                $region89: #{model_tanh_forward.1} parent=76 // loop_footer
                  %s602 = sadd.s32 %s600, 1
                $region90: #{model_tanh_forward.1} parent=76 // loop_footer_branch
                  %599 = sbr.rel target = $region86
                $region91: #{model_tanh_forward.1} parent=76 // loop_exit
                  _
                %s619 = sshllo.u32 0, %s435
                loop: start=0, step=1, limit=1
                $region92: #{model_tanh_forward.1} parent=76 // loop_pre_header
                  _
                $region93: #{model_tanh_forward.1} parent=76 // loop_header
                  %s621 = sphi 0, %s625
                  %p622 = scmp.ge.s32.totalorder %s621, 1
                  %s626 = sphi %s437, %s437
                  %s627 = sphi %s439, %s439
                $region94: #{model_tanh_forward.1} parent=76 // loop_header_branch
                  %624 = sbr.rel (%p622) target = $region98
                $region95: #{model_tanh_forward.1} parent=76 // loop_body
                  %v628 = vld [vmem:[%s626] sm:%s619]
                  %629 = vst [vmem:[%s627] sm:%s619] %v628
                  %v630 = vld [vmem:[%s626 + $0x14] sm:%s619]
                  %631 = vst [vmem:[%s627 + $0x8] sm:%s619] %v630
                $region96: #{model_tanh_forward.1} parent=76 // loop_footer
                  %s625 = sadd.s32 1, %s621
                $region97: #{model_tanh_forward.1} parent=76 // loop_footer_branch
                  %620 = sbr.rel target = $region93
                $region98: #{model_tanh_forward.1} parent=76 // loop_exit
                  _
              $region77: #{model_tanh_forward.1} parent=43 // pred_fallthru
                _
            $region44: #{model_tanh_forward.1} parent=39 // pred_fallthru
              _
            // Predicated region
            $region45: #{model_tanh_forward.1} parent=39 // pred_check
              %p232 = pneg %p228
            $region46: #{model_tanh_forward.1} parent=39 // pred_check_branch
              %234 = sbr.rel (%p232) target = $region48
            $region47: #{model_tanh_forward.1} parent=39 // pred_region
              %s235 = sshllo.u32 0, %s224
              loop: start=0, step=1, limit=1
              $region49: #{model_tanh_forward.1} parent=47 // loop_pre_header
                _
              $region50: #{model_tanh_forward.1} parent=47 // loop_header
                %s237 = sphi 0, %s241
                %p238 = scmp.ge.s32.totalorder %s237, 1
                %s242 = sphi %s223, %s223
                %s243 = sphi %s215, %s215
              $region51: #{model_tanh_forward.1} parent=47 // loop_header_branch
                %240 = sbr.rel (%p238) target = $region55
              $region52: #{model_tanh_forward.1} parent=47 // loop_body
                %v244 = vld [vmem:[%s242] sm:%s235]
                %245 = vst [vmem:[%s243] sm:%s235] %v244
                %v246 = vld [vmem:[%s242 + $0x14] sm:%s235]
                %247 = vst [vmem:[%s243 + $0x8] sm:%s235] %v246
              $region53: #{model_tanh_forward.1} parent=47 // loop_footer
                %s241 = sadd.s32 1, %s237
              $region54: #{model_tanh_forward.1} parent=47 // loop_footer_branch
                %236 = sbr.rel target = $region50
              $region55: #{model_tanh_forward.1} parent=47 // loop_exit
                _
            $region48: #{model_tanh_forward.1} parent=39 // pred_fallthru
              _
          $region40: #{model_tanh_forward.1} parent=35 // pred_fallthru
            _
          %632 = vnop
        $region36: #{model_tanh_forward.1} parent=31 // pred_fallthru
          _
        // Predicated region
        $region99: #{model_tanh_forward.1} parent=31 // pred_check
          %p633 = pneg %p62
        $region100: #{model_tanh_forward.1} parent=31 // pred_check_branch
          %635 = sbr.rel (%p633) target = $region102
        $region101: #{model_tanh_forward.1} parent=31 // pred_region
          %s636 = sand.u32 %s52, 1
          %s637 = sand.u32 %s52, 1
          %s638 = smul.addr %s637, 8
          %s639 = scalar_lea.vmem [#allocation5], %s638
          %s640 = sadd.s32 %s12, 1
          %s641 = smul.u32 %s640, 2
          %s642 = smul.addr %s641, 4
          %s643 = scalar_lea.vmem %s1, %s642
          // Predicated region
          $region103: #{model_tanh_forward.1} parent=101 // pred_check
            _
          $region104: #{model_tanh_forward.1} parent=101 // pred_check_branch
            %645 = sbr.rel (0) target = $region106
          $region105: #{model_tanh_forward.1} parent=101 // pred_region
            // Predicated region
            $region107: #{model_tanh_forward.1} parent=105 // pred_check
              _
            $region108: #{model_tanh_forward.1} parent=105 // pred_check_branch
              %647 = sbr.rel target = $region110
            $region109: #{model_tanh_forward.1} parent=105 // pred_region
              // Predicated region
              $region122: #{model_tanh_forward.1} parent=109 // pred_check
                _
              $region123: #{model_tanh_forward.1} parent=109 // pred_check_branch
                %664 = sbr.rel (0) target = $region125
              $region124: #{model_tanh_forward.1} parent=109 // pred_region
                loop: start=0, step=1, limit=1
                $region126: #{model_tanh_forward.1} parent=124 // loop_pre_header
                  _
                $region127: #{model_tanh_forward.1} parent=124 // loop_header
                  %s666 = sphi 0, %s670
                  %p667 = scmp.ge.s32.totalorder %s666, 1
                  %s671 = sphi %s643, %s643
                  %s672 = sphi %s639, %s639
                $region128: #{model_tanh_forward.1} parent=124 // loop_header_branch
                  %669 = sbr.rel (%p667) target = $region132
                $region129: #{model_tanh_forward.1} parent=124 // loop_body
                  _
                $region130: #{model_tanh_forward.1} parent=124 // loop_footer
                  %s670 = sadd.s32 1, %s666
                $region131: #{model_tanh_forward.1} parent=124 // loop_footer_branch
                  %665 = sbr.rel target = $region127
                $region132: #{model_tanh_forward.1} parent=124 // loop_exit
                  _
                loop: start=0, step=1, limit=1
                $region133: #{model_tanh_forward.1} parent=124 // loop_pre_header
                  _
                $region134: #{model_tanh_forward.1} parent=124 // loop_header
                  %s675 = sphi 0, %s679
                  %p676 = scmp.ge.s32.totalorder %s675, 1
                  %s680 = sphi %s643, %s643
                  %s681 = sphi %s639, %s639
                $region135: #{model_tanh_forward.1} parent=124 // loop_header_branch
                  %678 = sbr.rel (%p676) target = $region139
                $region136: #{model_tanh_forward.1} parent=124 // loop_body
                  %v682 = vld [vmem:[%s680] sm:$0xf]
                  %683 = vst [vmem:[%s681] sm:$0xf] %v682
                  %v684 = vld [vmem:[%s680 + $0x14] sm:$0xf]
                  %685 = vst [vmem:[%s681 + $0x4] sm:$0xf] %v684
                $region137: #{model_tanh_forward.1} parent=124 // loop_footer
                  %s679 = sadd.s32 1, %s675
                $region138: #{model_tanh_forward.1} parent=124 // loop_footer_branch
                  %674 = sbr.rel target = $region134
                $region139: #{model_tanh_forward.1} parent=124 // loop_exit
                  _
              $region125: #{model_tanh_forward.1} parent=109 // pred_fallthru
                _
            $region110: #{model_tanh_forward.1} parent=105 // pred_fallthru
              _
            // Predicated region
            $region111: #{model_tanh_forward.1} parent=105 // pred_check
              _
            $region112: #{model_tanh_forward.1} parent=105 // pred_check_branch
              %649 = sbr.rel (0) target = $region114
            $region113: #{model_tanh_forward.1} parent=105 // pred_region
              loop: start=0, step=1, limit=1
              $region115: #{model_tanh_forward.1} parent=113 // loop_pre_header
                _
              $region116: #{model_tanh_forward.1} parent=113 // loop_header
                %s652 = sphi 0, %s656
                %p653 = scmp.ge.s32.totalorder %s652, 1
                %s657 = sphi %s643, %s643
                %s658 = sphi %s639, %s639
              $region117: #{model_tanh_forward.1} parent=113 // loop_header_branch
                %655 = sbr.rel (%p653) target = $region121
              $region118: #{model_tanh_forward.1} parent=113 // loop_body
                %v659 = vld [vmem:[%s657] sm:$0xf]
                %660 = vst [vmem:[%s658] sm:$0xf] %v659
                %v661 = vld [vmem:[%s657 + $0x14] sm:$0xf]
                %662 = vst [vmem:[%s658 + $0x4] sm:$0xf] %v661
              $region119: #{model_tanh_forward.1} parent=113 // loop_footer
                %s656 = sadd.s32 1, %s652
              $region120: #{model_tanh_forward.1} parent=113 // loop_footer_branch
                %651 = sbr.rel target = $region116
              $region121: #{model_tanh_forward.1} parent=113 // loop_exit
                _
            $region114: #{model_tanh_forward.1} parent=105 // pred_fallthru
              _
          $region106: #{model_tanh_forward.1} parent=101 // pred_fallthru
            _
          %686 = vnop
        $region102: #{model_tanh_forward.1} parent=31 // pred_fallthru
          _
      $region32: #{model_tanh_forward.1} parent=5 // pred_fallthru
        _
      %p687 = scmp.le.s32.totalorder 1, %s12
      %p688 = scmp.lt.s32.totalorder %s12, 3
      %p689 = pnand %p687, %p688
      %p690 = pneg %p689
      // Predicated region
      $region140: #{model_tanh_forward.1} parent=5 // pred_check
        _
      $region141: #{model_tanh_forward.1} parent=5 // pred_check_branch
        %692 = sbr.rel (%p689) target = $region143
      $region142: #{model_tanh_forward.1} parent=5 // pred_region
        %s693 = ssub.s32 %s12, 1
        %s694 = sand.u32 %s25, 1
        %s695 = sand.u32 %s25, 1
        %s696 = smul.addr %s695, 16
        %s697 = scalar_lea.vmem [#allocation4], %s696
        // Predicated region
        $region144: #{model_tanh_forward.1} parent=142 // pred_check
          %p698 = pneg %p38
        $region145: #{model_tanh_forward.1} parent=142 // pred_check_branch
          %700 = sbr.rel (%p698) target = $region147
        $region146: #{model_tanh_forward.1} parent=142 // pred_region
          _
        $region147: #{model_tanh_forward.1} parent=142 // pred_fallthru
          _
        %s701 = sand.u32 %s55, 1
        %s702 = sand.u32 %s55, 1
        %s703 = smul.addr %s702, 8
        %s704 = scalar_lea.vmem [#allocation5], %s703
        // Predicated region
        $region148: #{model_tanh_forward.1} parent=142 // pred_check
          %p705 = pneg %p68
        $region149: #{model_tanh_forward.1} parent=142 // pred_check_branch
          %707 = sbr.rel (%p705) target = $region151
        $region150: #{model_tanh_forward.1} parent=142 // pred_region
          _
        $region151: #{model_tanh_forward.1} parent=142 // pred_fallthru
          _
        %s708 = sand.u32 %s25, 1
        %s709 = sand.u32 %s25, 1
        %s710 = smul.addr %s709, 16
        %s711 = scalar_lea.vmem [#allocation4], %s710
        %p712 = pneg %p38
        %p713 = pneg %p35
        %s714 = sand.u32 %s55, 1
        %s715 = sand.u32 %s55, 1
        %s716 = smul.addr %s715, 8
        %s717 = scalar_lea.vmem [#allocation5], %s716
        %p718 = pneg %p68
        %p719 = pneg %p65
        %p720 = pneg %p89
        %p721 = pneg %p86
        %p722 = pneg %p110
        %p723 = pneg %p107
        %p724 = pneg %p131
        %p725 = pneg %p128
        %p726 = pneg %p152
        %p727 = pneg %p149
        %p728 = pneg %p178
        %p729 = pneg %p175
        %s730 = sand.u32 %s165, 1
        %s731 = sand.u32 %s165, 1
        %s732 = smul.addr %s731, 24
        %s733 = scalar_lea.vmem [#allocation6], %s732
        %s734 = smul.u32 2, %s17
        %s735 = ssub.s32 5, %s734
        %p736 = scmp.lt.s32.totalorder %s735, 2
        %s737 = scalar_select %p736, %s735, 2
        %s738 = smul.u32 128, %s737
        %s739 = sadd.s32 %s17, 1
        %s740 = smul.u32 %s739, 2
        %s741 = smul.u32 2, %s17
        %v743 = vld [vmem:[%s697] sm:$0xff]
        %v744 = vld [vmem:[%s697 + $0x8] sm:$0xff]
        %v747 = vunpack.c.l.b16 %v743
        %v748 = vunpack.c.h.b16 %v743
        %v749 = vunpack.c.l.b16 %v744
        %v750 = vunpack.c.h.b16 %v744
        %v751 = vpack.c.b16 %v749, %v747
        %v752 = vpack.c.b16 %v750, %v748
        %755 = vst [vmem:[#allocation2] sm:$0xff] %v751
        %756 = vst [vmem:[#allocation2 + $0x8] sm:$0xff] %v752
        %v757 = vld [vmem:[%s704] sm:$0xf]
        %v758 = vld [vmem:[%s704 + $0x4] sm:$0xf]
        %v761 = vunpack.c.l.b16 %v757
        %v762 = vunpack.c.l.b16 %v758
        %v763 = vpack.c.b16 %v762, %v761
        %765 = vst [vmem:[#allocation2 + $0x10] sm:$0xff] %v763
        %v766 = vld [vmem:[#allocation2] sm:$0xff]
        %v767 = vld [vmem:[#allocation2 + $0x8] sm:$0xff]
        %768 = vst [vmem:[#allocation3] sm:$0xff] %v766
        %769 = vst [vmem:[#allocation3 + $0x8] sm:$0xff] %v767
        %v770 = vld [vmem:[#allocation2] sm:$0xff]
        %v771 = vld [vmem:[#allocation2 + $0x8] sm:$0xff]
        %v772 = vld [vmem:[#allocation2 + $0x10] sm:$0xff]
        %776 = vrot.lane.b32.xlu0 %v770, 127
        %v777 = vpop.permute.xlu0 %776
        %778 = vrot.lane.b32.xlu0 %v771, 127
        %v779 = vpop.permute.xlu0 %778
        %780 = vrot.lane.b32.xlu0 %v772, 127
        %v781 = vpop.permute.xlu0 %780
        %vm782 = vcmask 1039360
        %v783 = vsel %vm782, %v777, %v779
        %v784 = vsel %vm782, %v779, %v781
        %787 = vst [vmem:[#allocation3 + $0x10] sm:$0xff] %v783
        %788 = vst [vmem:[#allocation3 + $0x18] sm:$0xff] %v784
        %v789 = vld [vmem:[#allocation2] sm:$0xff]
        %v790 = vld [vmem:[#allocation2 + $0x8] sm:$0xff]
        %v791 = vld [vmem:[#allocation2 + $0x10] sm:$0xff]
        %795 = vrot.lane.b32.xlu0 %v789, 126
        %v796 = vpop.permute.xlu0 %795
        %797 = vrot.lane.b32.xlu0 %v790, 126
        %v798 = vpop.permute.xlu0 %797
        %799 = vrot.lane.b32.xlu0 %v791, 126
        %v800 = vpop.permute.xlu0 %799
        %vm801 = vcmask 1031168
        %v802 = vsel %vm801, %v796, %v798
        %v803 = vsel %vm801, %v798, %v800
        %806 = vst [vmem:[#allocation3 + $0x20] sm:$0xff] %v802
        %807 = vst [vmem:[#allocation3 + $0x28] sm:$0xff] %v803
        %v808 = vld [vmem:[#allocation2] sm:$0xff]
        %v809 = vld [vmem:[#allocation2 + $0x8] sm:$0xff]
        %v810 = vld [vmem:[#allocation2 + $0x10] sm:$0xff]
        %814 = vrot.lane.b32.xlu0 %v808, 125
        %v815 = vpop.permute.xlu0 %814
        %816 = vrot.lane.b32.xlu0 %v809, 125
        %v817 = vpop.permute.xlu0 %816
        %818 = vrot.lane.b32.xlu0 %v810, 125
        %v819 = vpop.permute.xlu0 %818
        %vm820 = vcmask 1022976
        %v821 = vsel %vm820, %v815, %v817
        %v822 = vsel %vm820, %v817, %v819
        %825 = vst [vmem:[#allocation3 + $0x30] sm:$0xff] %v821
        %826 = vst [vmem:[#allocation3 + $0x38] sm:$0xff] %v822
        %v827 = vld [vmem:[#allocation2] sm:$0xff]
        %v828 = vld [vmem:[#allocation2 + $0x8] sm:$0xff]
        %v829 = vld [vmem:[#allocation2 + $0x10] sm:$0xff]
        %833 = vrot.lane.b32.xlu0 %v827, 112
        %v834 = vpop.permute.xlu0 %833
        %835 = vrot.lane.b32.xlu0 %v828, 112
        %v836 = vpop.permute.xlu0 %835
        %837 = vrot.lane.b32.xlu0 %v829, 112
        %v838 = vpop.permute.xlu0 %837
        %vm839 = vcmask 916480
        %v840 = vsel %vm839, %v834, %v836
        %v841 = vsel %vm839, %v836, %v838
        %844 = vst [vmem:[#allocation3 + $0x40] sm:$0xff] %v840
        %845 = vst [vmem:[#allocation3 + $0x48] sm:$0xff] %v841
        %v846 = vld [vmem:[#allocation2] sm:$0xff]
        %v847 = vld [vmem:[#allocation2 + $0x8] sm:$0xff]
        %v848 = vld [vmem:[#allocation2 + $0x10] sm:$0xff]
        %852 = vrot.lane.b32.xlu0 %v846, 111
        %v853 = vpop.permute.xlu0 %852
        %854 = vrot.lane.b32.xlu0 %v847, 111
        %v855 = vpop.permute.xlu0 %854
        %856 = vrot.lane.b32.xlu0 %v848, 111
        %v857 = vpop.permute.xlu0 %856
        %vm858 = vcmask 908288
        %v859 = vsel %vm858, %v853, %v855
        %v860 = vsel %vm858, %v855, %v857
        %863 = vst [vmem:[#allocation3 + $0x50] sm:$0xff] %v859
        %864 = vst [vmem:[#allocation3 + $0x58] sm:$0xff] %v860
        %v865 = vld [vmem:[#allocation2] sm:$0xff]
        %v866 = vld [vmem:[#allocation2 + $0x8] sm:$0xff]
        %v867 = vld [vmem:[#allocation2 + $0x10] sm:$0xff]
        %871 = vrot.lane.b32.xlu0 %v865, 110
        %v872 = vpop.permute.xlu0 %871
        %873 = vrot.lane.b32.xlu0 %v866, 110
        %v874 = vpop.permute.xlu0 %873
        %875 = vrot.lane.b32.xlu0 %v867, 110
        %v876 = vpop.permute.xlu0 %875
        %vm877 = vcmask 900096
        %v878 = vsel %vm877, %v872, %v874
        %v879 = vsel %vm877, %v874, %v876
        %882 = vst [vmem:[#allocation3 + $0x60] sm:$0xff] %v878
        %883 = vst [vmem:[#allocation3 + $0x68] sm:$0xff] %v879
        %v884 = vld [vmem:[#allocation2] sm:$0xff]
        %v885 = vld [vmem:[#allocation2 + $0x8] sm:$0xff]
        %v886 = vld [vmem:[#allocation2 + $0x10] sm:$0xff]
        %890 = vrot.lane.b32.xlu0 %v884, 109
        %v891 = vpop.permute.xlu0 %890
        %892 = vrot.lane.b32.xlu0 %v885, 109
        %v893 = vpop.permute.xlu0 %892
        %894 = vrot.lane.b32.xlu0 %v886, 109
        %v895 = vpop.permute.xlu0 %894
        %vm896 = vcmask 891904
        %v897 = vsel %vm896, %v891, %v893
        %v898 = vsel %vm896, %v893, %v895
        %901 = vst [vmem:[#allocation3 + $0x70] sm:$0xff] %v897
        %902 = vst [vmem:[#allocation3 + $0x78] sm:$0xff] %v898
        %v903 = vld [vmem:[#allocation2] sm:$0xff]
        %v904 = vld [vmem:[#allocation2 + $0x8] sm:$0xff]
        %v905 = vld [vmem:[#allocation2 + $0x10] sm:$0xff]
        %909 = vrot.lane.b32.xlu0 %v903, 96
        %v910 = vpop.permute.xlu0 %909
        %911 = vrot.lane.b32.xlu0 %v904, 96
        %v912 = vpop.permute.xlu0 %911
        %913 = vrot.lane.b32.xlu0 %v905, 96
        %v914 = vpop.permute.xlu0 %913
        %vm915 = vcmask 785408
        %v916 = vsel %vm915, %v910, %v912
        %v917 = vsel %vm915, %v912, %v914
        %920 = vst [vmem:[#allocation3 + $0x80] sm:$0xff] %v916
        %921 = vst [vmem:[#allocation3 + $0x88] sm:$0xff] %v917
        %v922 = vld [vmem:[#allocation2] sm:$0xff]
        %v923 = vld [vmem:[#allocation2 + $0x8] sm:$0xff]
        %v924 = vld [vmem:[#allocation2 + $0x10] sm:$0xff]
        %928 = vrot.lane.b32.xlu0 %v922, 95
        %v929 = vpop.permute.xlu0 %928
        %930 = vrot.lane.b32.xlu0 %v923, 95
        %v931 = vpop.permute.xlu0 %930
        %932 = vrot.lane.b32.xlu0 %v924, 95
        %v933 = vpop.permute.xlu0 %932
        %vm934 = vcmask 777216
        %v935 = vsel %vm934, %v929, %v931
        %v936 = vsel %vm934, %v931, %v933
        %939 = vst [vmem:[#allocation3 + $0x90] sm:$0xff] %v935
        %940 = vst [vmem:[#allocation3 + $0x98] sm:$0xff] %v936
        %v941 = vld [vmem:[#allocation2] sm:$0xff]
        %v942 = vld [vmem:[#allocation2 + $0x8] sm:$0xff]
        %v943 = vld [vmem:[#allocation2 + $0x10] sm:$0xff]
        %947 = vrot.lane.b32.xlu0 %v941, 94
        %v948 = vpop.permute.xlu0 %947
        %949 = vrot.lane.b32.xlu0 %v942, 94
        %v950 = vpop.permute.xlu0 %949
        %951 = vrot.lane.b32.xlu0 %v943, 94
        %v952 = vpop.permute.xlu0 %951
        %vm953 = vcmask 769024
        %v954 = vsel %vm953, %v948, %v950
        %v955 = vsel %vm953, %v950, %v952
        %958 = vst [vmem:[#allocation3 + $0xa0] sm:$0xff] %v954
        %959 = vst [vmem:[#allocation3 + $0xa8] sm:$0xff] %v955
        %v960 = vld [vmem:[#allocation2] sm:$0xff]
        %v961 = vld [vmem:[#allocation2 + $0x8] sm:$0xff]
        %v962 = vld [vmem:[#allocation2 + $0x10] sm:$0xff]
        %966 = vrot.lane.b32.xlu0 %v960, 93
        %v967 = vpop.permute.xlu0 %966
        %968 = vrot.lane.b32.xlu0 %v961, 93
        %v969 = vpop.permute.xlu0 %968
        %970 = vrot.lane.b32.xlu0 %v962, 93
        %v971 = vpop.permute.xlu0 %970
        %vm972 = vcmask 760832
        %v973 = vsel %vm972, %v967, %v969
        %v974 = vsel %vm972, %v969, %v971
        %977 = vst [vmem:[#allocation3 + $0xb0] sm:$0xff] %v973
        %978 = vst [vmem:[#allocation3 + $0xb8] sm:$0xff] %v974
        %v979 = vld [vmem:[#allocation2] sm:$0xff]
        %v980 = vld [vmem:[#allocation2 + $0x8] sm:$0xff]
        %v981 = vld [vmem:[#allocation2 + $0x10] sm:$0xff]
        %985 = vrot.lane.b32.xlu0 %v979, 80
        %v986 = vpop.permute.xlu0 %985
        %987 = vrot.lane.b32.xlu0 %v980, 80
        %v988 = vpop.permute.xlu0 %987
        %989 = vrot.lane.b32.xlu0 %v981, 80
        %v990 = vpop.permute.xlu0 %989
        %vm991 = vcmask 654336
        %v992 = vsel %vm991, %v986, %v988
        %v993 = vsel %vm991, %v988, %v990
        %996 = vst [vmem:[#allocation3 + $0xc0] sm:$0xff] %v992
        %997 = vst [vmem:[#allocation3 + $0xc8] sm:$0xff] %v993
        %v998 = vld [vmem:[#allocation2] sm:$0xff]
        %v999 = vld [vmem:[#allocation2 + $0x8] sm:$0xff]
        %v1000 = vld [vmem:[#allocation2 + $0x10] sm:$0xff]
        %1004 = vrot.lane.b32.xlu0 %v998, 79
        %v1005 = vpop.permute.xlu0 %1004
        %1006 = vrot.lane.b32.xlu0 %v999, 79
        %v1007 = vpop.permute.xlu0 %1006
        %1008 = vrot.lane.b32.xlu0 %v1000, 79
        %v1009 = vpop.permute.xlu0 %1008
        %vm1010 = vcmask 646144
        %v1011 = vsel %vm1010, %v1005, %v1007
        %v1012 = vsel %vm1010, %v1007, %v1009
        %1015 = vst [vmem:[#allocation3 + $0xd0] sm:$0xff] %v1011
        %1016 = vst [vmem:[#allocation3 + $0xd8] sm:$0xff] %v1012
        %v1017 = vld [vmem:[#allocation2] sm:$0xff]
        %v1018 = vld [vmem:[#allocation2 + $0x8] sm:$0xff]
        %v1019 = vld [vmem:[#allocation2 + $0x10] sm:$0xff]
        %1023 = vrot.lane.b32.xlu0 %v1017, 78
        %v1024 = vpop.permute.xlu0 %1023
        %1025 = vrot.lane.b32.xlu0 %v1018, 78
        %v1026 = vpop.permute.xlu0 %1025
        %1027 = vrot.lane.b32.xlu0 %v1019, 78
        %v1028 = vpop.permute.xlu0 %1027
        %vm1029 = vcmask 637952
        %v1030 = vsel %vm1029, %v1024, %v1026
        %v1031 = vsel %vm1029, %v1026, %v1028
        %1034 = vst [vmem:[#allocation3 + $0xe0] sm:$0xff] %v1030
        %1035 = vst [vmem:[#allocation3 + $0xe8] sm:$0xff] %v1031
        %v1036 = vld [vmem:[#allocation2] sm:$0xff]
        %v1037 = vld [vmem:[#allocation2 + $0x8] sm:$0xff]
        %v1038 = vld [vmem:[#allocation2 + $0x10] sm:$0xff]
        %1042 = vrot.lane.b32.xlu0 %v1036, 77
        %v1043 = vpop.permute.xlu0 %1042
        %1044 = vrot.lane.b32.xlu0 %v1037, 77
        %v1045 = vpop.permute.xlu0 %1044
        %1046 = vrot.lane.b32.xlu0 %v1038, 77
        %v1047 = vpop.permute.xlu0 %1046
        %vm1048 = vcmask 629760
        %v1049 = vsel %vm1048, %v1043, %v1045
        %v1050 = vsel %vm1048, %v1045, %v1047
        %1053 = vst [vmem:[#allocation3 + $0xf0] sm:$0xff] %v1049
        %1054 = vst [vmem:[#allocation3 + $0xf8] sm:$0xff] %v1050
        %v1055 = vld [vmem:[%s2] sm:$0xff]
        %v1056 = vld [vmem:[%s2 + $0x8] sm:$0xff]
        %v1057 = vld [vmem:[%s2 + $0x10] sm:$0x33]
        %v1058 = vld [vmem:[#allocation3] sm:$0xff]
        %v1059 = vld [vmem:[#allocation3 + $0x8] sm:$0xff]
        %v1060 = vld [vmem:[#allocation3 + $0x10] sm:$0xff]
        %v1061 = vld [vmem:[#allocation3 + $0x18] sm:$0xff]
        %v1062 = vld [vmem:[#allocation3 + $0x20] sm:$0xff]
        %v1063 = vld [vmem:[#allocation3 + $0x28] sm:$0xff]
        %v1064 = vld [vmem:[#allocation3 + $0x30] sm:$0xff]
        %v1065 = vld [vmem:[#allocation3 + $0x38] sm:$0xff]
        %v1066 = vld [vmem:[#allocation3 + $0x40] sm:$0xff]
        %v1067 = vld [vmem:[#allocation3 + $0x48] sm:$0xff]
        %v1068 = vld [vmem:[#allocation3 + $0x50] sm:$0xff]
        %v1069 = vld [vmem:[#allocation3 + $0x58] sm:$0xff]
        %v1070 = vld [vmem:[#allocation3 + $0x60] sm:$0xff]
        %v1071 = vld [vmem:[#allocation3 + $0x68] sm:$0xff]
        %v1072 = vld [vmem:[#allocation3 + $0x70] sm:$0xff]
        %v1073 = vld [vmem:[#allocation3 + $0x78] sm:$0xff]
        %v1074 = vld [vmem:[#allocation3 + $0x80] sm:$0xff]
        %v1075 = vld [vmem:[#allocation3 + $0x88] sm:$0xff]
        %v1076 = vld [vmem:[#allocation3 + $0x90] sm:$0xff]
        %v1077 = vld [vmem:[#allocation3 + $0x98] sm:$0xff]
        %v1078 = vld [vmem:[#allocation3 + $0xa0] sm:$0xff]
        %v1079 = vld [vmem:[#allocation3 + $0xa8] sm:$0xff]
        %v1080 = vld [vmem:[#allocation3 + $0xb0] sm:$0xff]
        %v1081 = vld [vmem:[#allocation3 + $0xb8] sm:$0xff]
        %v1082 = vld [vmem:[#allocation3 + $0xc0] sm:$0xff]
        %v1083 = vld [vmem:[#allocation3 + $0xc8] sm:$0xff]
        %v1084 = vld [vmem:[#allocation3 + $0xd0] sm:$0xff]
        %v1085 = vld [vmem:[#allocation3 + $0xd8] sm:$0xff]
        %v1086 = vld [vmem:[#allocation3 + $0xe0] sm:$0xff]
        %v1087 = vld [vmem:[#allocation3 + $0xe8] sm:$0xff]
        %v1088 = vld [vmem:[#allocation3 + $0xf0] sm:$0xff]
        %v1089 = vld [vmem:[#allocation3 + $0xf8] sm:$0xff]
        %v1090 = vld [vmem:[%s3] sm:$0xff]
        %v1091 = vld [vmem:[%s3 + $0x8] sm:$0xff]
        %v1092 = vld [vmem:[%s3 + $0x10] sm:$0xf]
        %1094 = vset.pattern.permute.xlu0 0
        %1095 = vperm.xlu0 %1094, %v1090
        %v1096 = vpop.permute.xlu0 %1095
        %1099 = vset.pattern.permute.xlu0 0
        %1100 = vperm.xlu0 %1099, %v1091
        %v1101 = vpop.permute.xlu0 %1100
        %1104 = vset.pattern.permute.xlu0 0
        %1105 = vperm.xlu0 %1104, %v1092
        %v1106 = vpop.permute.xlu0 %1105
        %v1111 = vunpack.c.l.b16 %v1055
        %v1112 = vunpack.c.h.b16 %v1055
        %v1113 = vunpack.c.l.b16 %v1056
        %v1114 = vunpack.c.h.b16 %v1056
        %v1115 = vunpack.c.l.b16 %v1057
        %v1116 = vunpack.c.h.b16 %v1057
        %v1117 = vpack.c.b16 %v1113, %v1111
        %v1118 = vpack.c.b16 %v1114, %v1112
        %v1119 = vpack.c.b16 %v1115, %v1115
        %v1120 = vpack.c.b16 %v1116, %v1116
        %1125 = vmatprep.subr.bf16.mxu0 %v1059
        %1126 = vmatpush1.bf16.msra.mxu0 %v1058
        %1127 = vmatprep.subr.bf16.mxu0 %v1061
        %1128 = vmatpush1.bf16.msra.mxu0 %v1060
        %1129 = vmatprep.subr.bf16.mxu0 %v1063
        %1130 = vmatpush1.bf16.msra.mxu0 %v1062
        %1131 = vmatprep.subr.bf16.mxu0 %v1065
        %1132 = vmatpush1.bf16.msra.mxu0 %v1064
        %1133 = vmatprep.subr.bf16.mxu0 %v1067
        %1134 = vmatpush1.bf16.msra.mxu0 %v1066
        %1135 = vmatprep.subr.bf16.mxu0 %v1069
        %1136 = vmatpush1.bf16.msra.mxu0 %v1068
        %1137 = vmatprep.subr.bf16.mxu0 %v1071
        %1138 = vmatpush1.bf16.msra.mxu0 %v1070
        %1139 = vmatprep.subr.bf16.mxu0 %v1073
        %1140 = vmatpush1.bf16.msra.mxu0 %v1072
        %1141 = vmatprep.subr.bf16.mxu0 %v1075
        %1142 = vmatpush1.bf16.msra.mxu0 %v1074
        %1143 = vmatprep.subr.bf16.mxu0 %v1077
        %1144 = vmatpush1.bf16.msra.mxu0 %v1076
        %1145 = vmatprep.subr.bf16.mxu0 %v1079
        %1146 = vmatpush1.bf16.msra.mxu0 %v1078
        %1147 = vmatprep.subr.bf16.mxu0 %v1081
        %1148 = vmatpush1.bf16.msra.mxu0 %v1080
        %1149 = vmatprep.subr.bf16.mxu0 %v1083
        %1150 = vmatpush1.bf16.msra.mxu0 %v1082
        %1151 = vmatprep.subr.bf16.mxu0 %v1085
        %1152 = vmatpush1.bf16.msra.mxu0 %v1084
        %1153 = vmatprep.subr.bf16.mxu0 %v1087
        %1154 = vmatpush1.bf16.msra.mxu0 %v1086
        %1155 = vmatprep.subr.bf16.mxu0 %v1089
        %1156 = vmatpush1.bf16.msra.mxu0 %v1088
        %1157 = vmatprep.mubr.bf16.mxu0 %v1118
        %1158 = vmatmul.mubr.bf16.gmra.mrb[0].mxu0 %v1117
        %v1159 = vpop.f32.mrb[0].mxu0
        %v1160 = vadd.f32 %v1096, %v1159
        %v1161 = vpop.f32.mrb[0].mxu0
        %v1162 = vadd.f32 %v1096, %v1161
        %v1163 = vpop.f32.mrb[0].mxu0
        %v1164 = vadd.f32 %v1101, %v1163
        %v1165 = vpop.f32.mrb[0].mxu0
        %v1166 = vadd.f32 %v1101, %v1165
        %1167 = vmatprep.mubr.bf16.mxu0 %v1120
        %1168 = vmatmul.mubr.bf16.gmra.mrb[0].mxu0 %v1119
        %v1169 = vpop.f32.mrb[0].mxu0
        %v1170 = vadd.f32 %v1106, %v1169
        %v1171 = vpop.f32.mrb[0].mxu0
        %v1172 = vadd.f32 %v1106, %v1171
        %v1173 = vpop.f32.mrb[0].mxu0
        %v1174 = vpop.f32.mrb[0].mxu0
        %1175 = vdwg.mxu0
        %v1176 = vmax.f32 %v1160, 0.0
        %v1177 = vmax.f32 %v1162, 0.0
        %v1178 = vmax.f32 %v1164, 0.0
        %v1179 = vmax.f32 %v1166, 0.0
        %v1180 = vmax.f32 %v1170, 0.0
        %v1181 = vmax.f32 %v1172, 0.0
        %v1182 = vpack.c.bf16 %v1178, %v1176
        %v1183 = vpack.c.bf16 %v1179, %v1177
        %v1184 = vpack.c.bf16 %v1180, %v1180
        %v1185 = vpack.c.bf16 %v1181, %v1181
        %v1186 = vld [vmem:[%s4] sm:$0xf]
        %v1187 = vld [vmem:[%s4 + $0x4] sm:$0xf]
        %v1188 = vld [vmem:[%s4 + $0x8] sm:$0x3]
        %v1189 = vld [vmem:[%s5] sm:$0xff]
        %v1190 = vld [vmem:[%s5 + $0x8] sm:$0xff]
        %v1191 = vld [vmem:[%s5 + $0x10] sm:$0xf]
        %1193 = vset.pattern.permute.xlu0 0
        %1194 = vperm.xlu0 %1193, %v1189
        %v1195 = vpop.permute.xlu0 %1194
        %1198 = vset.pattern.permute.xlu0 0
        %1199 = vperm.xlu0 %1198, %v1190
        %v1200 = vpop.permute.xlu0 %1199
        %1203 = vset.pattern.permute.xlu0 0
        %1204 = vperm.xlu0 %1203, %v1191
        %v1205 = vpop.permute.xlu0 %1204
        %v1210 = vunpack.c.l.b16 %v1186
        %v1211 = vunpack.c.l.b16 %v1187
        %v1212 = vunpack.c.l.b16 %v1188
        %v1213 = vpack.c.b16 %v1211, %v1210
        %v1214 = vpack.c.b16 %v1212, %v1212
        %vm1215 = vcmask 162816
        %v1217 = vsel %vm1215, %v1213, 0
        %v1220 = vsel %vm1215, %v1214, 0
        %vm1222 = vcmask 1041408
        %v1224 = vsel %vm1222, %v1184, 0
        %v1227 = vsel %vm1222, %v1185, 0
        %1229 = vmatprep.subr.bf16.mxu0 %v1183
        %1230 = vmatpush1.bf16.msra.mxu0 %v1182
        %1231 = vmatprep.subr.bf16.mxu0 %v1227
        %1232 = vmatpush1.bf16.msra.mxu0 %v1224
        %1233 = vmatprep.subr.bf16.mxu0 0
        %1234 = vmatpush1.bf16.msra.mxu0 0
        %1235 = vmatprep.subr.bf16.mxu0 0
        %1236 = vmatpush1.bf16.msra.mxu0 0
        %1237 = vmatprep.subr.bf16.mxu0 0
        %1238 = vmatpush1.bf16.msra.mxu0 0
        %1239 = vmatprep.subr.bf16.mxu0 0
        %1240 = vmatpush1.bf16.msra.mxu0 0
        %1241 = vmatprep.subr.bf16.mxu0 0
        %1242 = vmatpush1.bf16.msra.mxu0 0
        %1243 = vmatprep.subr.bf16.mxu0 0
        %1244 = vmatpush1.bf16.msra.mxu0 0
        %1245 = vmatprep.subr.bf16.mxu0 0
        %1246 = vmatpush1.bf16.msra.mxu0 0
        %1247 = vmatprep.subr.bf16.mxu0 0
        %1248 = vmatpush1.bf16.msra.mxu0 0
        %1249 = vmatprep.subr.bf16.mxu0 0
        %1250 = vmatpush1.bf16.msra.mxu0 0
        %1251 = vmatprep.subr.bf16.mxu0 0
        %1252 = vmatpush1.bf16.msra.mxu0 0
        %1253 = vmatprep.subr.bf16.mxu0 0
        %1254 = vmatpush1.bf16.msra.mxu0 0
        %1255 = vmatprep.subr.bf16.mxu0 0
        %1256 = vmatpush1.bf16.msra.mxu0 0
        %1257 = vmatprep.subr.bf16.mxu0 0
        %1258 = vmatpush1.bf16.msra.mxu0 0
        %1259 = vmatprep.subr.bf16.mxu0 0
        %1260 = vmatpush1.bf16.msra.mxu0 0
        %1261 = vmatprep.mubr.bf16.mxu0 0
        %1262 = vmatmul.mubr.bf16.gmra.mrb[0].mxu0 %v1217
        %v1263 = vpop.f32.mrb[0].mxu0
        %v1264 = vadd.f32 %v1195, %v1263
        %v1265 = vpop.f32.mrb[0].mxu0
        %v1266 = vadd.f32 %v1195, %v1265
        %v1267 = vpop.f32.mrb[0].mxu0
        %v1268 = vadd.f32 %v1200, %v1267
        %v1269 = vpop.f32.mrb[0].mxu0
        %v1270 = vadd.f32 %v1200, %v1269
        %1271 = vmatprep.mubr.bf16.mxu0 0
        %1272 = vmatmul.mubr.bf16.gmra.mrb[0].mxu0 %v1220
        %v1273 = vpop.f32.mrb[0].mxu0
        %v1274 = vadd.f32 %v1205, %v1273
        %v1275 = vpop.f32.mrb[0].mxu0
        %v1276 = vadd.f32 %v1205, %v1275
        %v1277 = vpop.f32.mrb[0].mxu0
        %v1278 = vpop.f32.mrb[0].mxu0
        %1279 = vdwg.mxu0
        %v1280 = vtanh.pop %v1264
        %v1281 = vtanh.pop %v1266
        %v1282 = vtanh.pop %v1268
        %v1283 = vtanh.pop %v1270
        %v1284 = vtanh.pop %v1274
        %v1285 = vtanh.pop %v1276
        %v1286 = vpack.c.bf16 %v1282, %v1280
        %v1287 = vpack.c.bf16 %v1283, %v1281
        %v1288 = vpack.c.bf16 %v1284, %v1284
        %v1289 = vpack.c.bf16 %v1285, %v1285
        %v1294 = vunpack.c.l.b16 %v1286
        %v1295 = vunpack.c.l.b16 %v1287
        %v1296 = vunpack.c.h.b16 %v1286
        %v1297 = vunpack.c.h.b16 %v1287
        %v1298 = vunpack.c.l.b16 %v1288
        %v1299 = vunpack.c.l.b16 %v1289
        %v1300 = vpack.c.b16 %v1295, %v1294
        %v1301 = vpack.c.b16 %v1297, %v1296
        %v1302 = vpack.c.b16 %v1299, %v1298
        %1306 = vst [vmem:[%s733] sm:$0xff] %v1300
        %1307 = vst [vmem:[%s733 + $0x8] sm:$0xff] %v1301
        %1308 = vst [vmem:[%s733 + $0x10] sm:$0x33] %v1302
        %s1309 = sand.u32 %s165, 1
        %s1310 = sand.u32 %s165, 1
        %s1311 = smul.addr %s1310, 24
        %s1312 = scalar_lea.vmem [#allocation6], %s1311
        // Predicated region
        $region152: #{model_tanh_forward.1} parent=142 // pred_check
          %p1313 = pneg %p175
        $region153: #{model_tanh_forward.1} parent=142 // pred_check_branch
          %1315 = sbr.rel (%p1313) target = $region155
        $region154: #{model_tanh_forward.1} parent=142 // pred_region
          %s1316 = smul.u32 2, %s17
          %s1317 = smul.addr %s1316, 4
          %s1318 = scalar_lea.vmem %s6, %s1317
          // Predicated region
          $region156: #{model_tanh_forward.1} parent=154 // pred_check
            _
          $region157: #{model_tanh_forward.1} parent=154 // pred_check_branch
            %1320 = sbr.rel (0) target = $region159
          $region158: #{model_tanh_forward.1} parent=154 // pred_region
            // Predicated region
            $region160: #{model_tanh_forward.1} parent=158 // pred_check
              _
            $region161: #{model_tanh_forward.1} parent=158 // pred_check_branch
              %1322 = sbr.rel (0) target = $region163
            $region162: #{model_tanh_forward.1} parent=158 // pred_region
              // Predicated region
              $region175: #{model_tanh_forward.1} parent=162 // pred_check
                _
              $region176: #{model_tanh_forward.1} parent=162 // pred_check_branch
                %1341 = sbr.rel (0) target = $region178
              $region177: #{model_tanh_forward.1} parent=162 // pred_region
                loop: start=0, step=1, limit=1
                $region179: #{model_tanh_forward.1} parent=177 // loop_pre_header
                  _
                $region180: #{model_tanh_forward.1} parent=177 // loop_header
                  %s1343 = sphi 0, %s1347
                  %p1344 = scmp.ge.s32.totalorder %s1343, 1
                  %s1348 = sphi %s1312, %s1312
                  %s1349 = sphi %s1318, %s1318
                $region181: #{model_tanh_forward.1} parent=177 // loop_header_branch
                  %1346 = sbr.rel (%p1344) target = $region185
                $region182: #{model_tanh_forward.1} parent=177 // loop_body
                  %v1350 = vld [vmem:[%s1348] sm:$0xff]
                  %1351 = vst [vmem:[%s1349] sm:$0xff] %v1350
                  %v1352 = vld [vmem:[%s1348 + $0x8] sm:$0xff]
                  %1353 = vst [vmem:[%s1349 + $0x10] sm:$0xff] %v1352
                  %v1354 = vld [vmem:[%s1348 + $0x10] sm:$0xff]
                  %1355 = vst [vmem:[%s1349 + $0x20] sm:$0xff] %v1354
                $region183: #{model_tanh_forward.1} parent=177 // loop_footer
                  %s1347 = sadd.s32 1, %s1343
                $region184: #{model_tanh_forward.1} parent=177 // loop_footer_branch
                  %1342 = sbr.rel target = $region180
                $region185: #{model_tanh_forward.1} parent=177 // loop_exit
                  _
              $region178: #{model_tanh_forward.1} parent=162 // pred_fallthru
                _
              // Predicated region
              $region186: #{model_tanh_forward.1} parent=162 // pred_check
                _
              $region187: #{model_tanh_forward.1} parent=162 // pred_check_branch
                %1357 = sbr.rel target = $region189
              $region188: #{model_tanh_forward.1} parent=162 // pred_region
                _
              $region189: #{model_tanh_forward.1} parent=162 // pred_fallthru
                _
            $region163: #{model_tanh_forward.1} parent=158 // pred_fallthru
              _
            // Predicated region
            $region164: #{model_tanh_forward.1} parent=158 // pred_check
              _
            $region165: #{model_tanh_forward.1} parent=158 // pred_check_branch
              %1324 = sbr.rel target = $region167
            $region166: #{model_tanh_forward.1} parent=158 // pred_region
              loop: start=0, step=1, limit=1
              $region168: #{model_tanh_forward.1} parent=166 // loop_pre_header
                _
              $region169: #{model_tanh_forward.1} parent=166 // loop_header
                %s1327 = sphi 0, %s1331
                %p1328 = scmp.ge.s32.totalorder %s1327, 1
                %s1332 = sphi %s1312, %s1312
                %s1333 = sphi %s1318, %s1318
              $region170: #{model_tanh_forward.1} parent=166 // loop_header_branch
                %1330 = sbr.rel (%p1328) target = $region174
              $region171: #{model_tanh_forward.1} parent=166 // loop_body
                %v1334 = vld [vmem:[%s1332] sm:$0xff]
                %1335 = vst [vmem:[%s1333] sm:$0xff] %v1334
                %v1336 = vld [vmem:[%s1332 + $0x8] sm:$0xff]
                %1337 = vst [vmem:[%s1333 + $0x10] sm:$0xff] %v1336
                %v1338 = vld [vmem:[%s1332 + $0x10] sm:$0xff]
                %1339 = vst [vmem:[%s1333 + $0x20] sm:$0xff] %v1338
              $region172: #{model_tanh_forward.1} parent=166 // loop_footer
                %s1331 = sadd.s32 1, %s1327
              $region173: #{model_tanh_forward.1} parent=166 // loop_footer_branch
                %1326 = sbr.rel target = $region169
              $region174: #{model_tanh_forward.1} parent=166 // loop_exit
                _
            $region167: #{model_tanh_forward.1} parent=158 // pred_fallthru
              _
          $region159: #{model_tanh_forward.1} parent=154 // pred_fallthru
            _
          %1358 = vnop
        $region155: #{model_tanh_forward.1} parent=142 // pred_fallthru
          _
      $region143: #{model_tanh_forward.1} parent=5 // pred_fallthru
        _
      %p1359 = scmp.le.s32.totalorder 2, %s12
      // Predicated region
      $region190: #{model_tanh_forward.1} parent=5 // pred_check
        %p1360 = pneg %p1359
      $region191: #{model_tanh_forward.1} parent=5 // pred_check_branch
        %1362 = sbr.rel (%p1360) target = $region193
      $region192: #{model_tanh_forward.1} parent=5 // pred_region
        %s1363 = ssub.s32 %s12, 2
        // Predicated region
        $region194: #{model_tanh_forward.1} parent=192 // pred_check
          %p1364 = pneg %p181
        $region195: #{model_tanh_forward.1} parent=192 // pred_check_branch
          %1366 = sbr.rel (%p1364) target = $region197
        $region196: #{model_tanh_forward.1} parent=192 // pred_region
          %s1367 = sand.u32 %s166, 1
          %s1368 = sand.u32 %s166, 1
          %s1369 = smul.addr %s1368, 24
          %s1370 = scalar_lea.vmem [#allocation6], %s1369
        $region197: #{model_tanh_forward.1} parent=192 // pred_fallthru
          _
      $region193: #{model_tanh_forward.1} parent=5 // pred_fallthru
        _
    $region6: #{model_tanh_forward.1} parent=1 // loop_footer
      %s16 = sadd.s32 1, %s12
    $region7: #{model_tanh_forward.1} parent=1 // loop_footer_branch
      %11 = sbr.rel target = $region3
    $region8: #{model_tanh_forward.1} parent=1 // loop_exit
      _

</llo_original>
